<compile_context>
chip_gen: v5e
topology: v5e:2x2
jax: 0.10.0
libtpu: 0.0.40
codegen_flags: <defaults>
</compile_context>

<pallas_src>
import math
import functools

import jax
import jax.numpy as jnp
from jax.experimental import pallas as pl
from jax.experimental.pallas import tpu as pltpu


def _layer_norm(x, gamma, beta, eps=1e-5):
    # PyTorch nn.LayerNorm: biased variance over the last dim, eps inside sqrt.
    mu = jnp.mean(x, axis=-1, keepdims=True)
    var = jnp.mean((x - mu) ** 2, axis=-1, keepdims=True)
    return (x - mu) * jax.lax.rsqrt(var + eps) * gamma + beta


def encoder_layer_kernel(
    x_ref, mask_ref,
    wqkv_ref, bqkv_ref, wo_ref, bo_ref,
    g1_ref, be1_ref,
    w1_ref, b1_ref, w2_ref, b2_ref,
    g2_ref, be2_ref,
    o_ref,
    q_sc, k_sc, v_sc, ctx_sc,
    *, num_heads, mxu_dtype,
):
    f32 = jnp.float32
    Bt, S, E = x_ref.shape
    H = num_heads
    D = E // H
    N = Bt * S
    scale = f32(1.0 / math.sqrt(D))

    x = x_ref[...].astype(f32)          # (Bt, S, E)
    xf = x.reshape(N, E)                # token-major slab (S % 8 == 0 -> clean retile)

    # ---- Fused QKV projection: one (N, E) @ (E, 3E) MXU contraction ----------
    qkv = jnp.dot(xf.astype(mxu_dtype), wqkv_ref[...],
                  preferred_element_type=f32) + bqkv_ref[...]          # (N, 3E) f32

    # ---- Regroup heads into a batched (G = H*Bt, S, D) layout via VMEM scratch.
    # Aligned lane slices + full-block stores only (no lane-splitting reshapes).
    for h in range(H):
        for b in range(Bt):
            g = h * Bt + b
            r0, r1 = b * S, (b + 1) * S
            q_sc[g] = qkv[r0:r1, h * D:(h + 1) * D]
            k_sc[g] = qkv[r0:r1, E + h * D:E + (h + 1) * D]
            v_sc[g] = qkv[r0:r1, 2 * E + h * D:2 * E + (h + 1) * D]

    qh = q_sc[...].astype(mxu_dtype)    # (G, S, D)
    kh = k_sc[...].astype(mxu_dtype)
    vh = v_sc[...].astype(mxu_dtype)

    # ---- Batched attention scores for all (head, batch) pairs at once (no k.T) ----
    s = jnp.einsum('gqd,gkd->gqk', qh, kh,
                   preferred_element_type=f32) * scale                 # (G, S, S)

    # Additive key mask, computed once and broadcast over heads / query positions.
    m = mask_ref[...].astype(f32)                                      # (Bt, 1, S)
    madd = jnp.where(m > 0, f32(0.0), f32(-1e9))                       # (Bt, 1, S)
    madd = jnp.broadcast_to(madd[None], (H, Bt, 1, S)).reshape(H * Bt, 1, S)
    s = s + madd

    # ---- Softmax (f32 on VPU; reciprocal on the otherwise-idle EUP) ----------
    s = s - jnp.max(s, axis=-1, keepdims=True)
    p = jnp.exp(s)
    p = p * pl.reciprocal(jnp.sum(p, axis=-1, keepdims=True), approx=True)

    # ---- PV: batched (G, S, S) @ (G, S, D) ------------------------------------
    ctx = jnp.einsum('gqk,gkd->gqd', p.astype(mxu_dtype), vh,
                     preferred_element_type=f32)                       # (G, S, D)

    # Merge heads back into a lane-dense (N, E) slab via aligned scratch stores.
    for h in range(H):
        for b in range(Bt):
            g = h * Bt + b
            ctx_sc[b * S:(b + 1) * S, h * D:(h + 1) * D] = ctx[g]

    attn = jnp.dot(ctx_sc[...].astype(mxu_dtype), wo_ref[...],
                   preferred_element_type=f32) + bo_ref[...]

    # ---- Residual + LayerNorm 1 ------------------------------------------------
    x1 = _layer_norm(attn + xf, g1_ref[...], be1_ref[...])

    # ---- FeedForward: Linear -> ReLU -> Linear ----------------------------------
    h1 = jnp.dot(x1.astype(mxu_dtype), w1_ref[...],
                 preferred_element_type=f32) + b1_ref[...]
    h1 = jnp.maximum(h1, f32(0.0))
    ff = jnp.dot(h1.astype(mxu_dtype), w2_ref[...],
                 preferred_element_type=f32) + b2_ref[...]

    # ---- Residual + LayerNorm 2 -------------------------------------------------
    out = _layer_norm(ff + x1, g2_ref[...], be2_ref[...])

    o_ref[...] = out.reshape(Bt, S, E).astype(o_ref.dtype)


def encoder_layer(x, mask, params, *, num_heads, b_tile=1, mxu_dtype=jnp.bfloat16):
    """x: (B, S, E) f32; mask: (B, 1, S) f32 (1 keep / 0 mask)."""
    B, S, E = x.shape
    assert E % num_heads == 0, "num_heads must divide emb_dim"
    assert B % b_tile == 0, "b_tile must divide batch"
    assert b_tile == 1 or S % 8 == 0, "batch folding requires S % 8 == 0"
    D = E // num_heads
    F = params["w1"].shape[1]
    G = num_heads * b_tile
    N = b_tile * S

    # Host-side param prep: fuse Q|K|V into one (E, 3E) weight; store MXU-side
    # weights in the MXU input dtype (bf16 on v6e/v7x, also ~4x less weight VMEM).
    wqkv = jnp.concatenate([params["wq"], params["wk"], params["wv"]], axis=1).astype(mxu_dtype)
    bqkv = jnp.concatenate([params["bq"], params["bk"], params["bv"]], axis=1)
    wo = params["wo"].astype(mxu_dtype)
    w1 = params["w1"].astype(mxu_dtype)
    w2 = params["w2"].astype(mxu_dtype)

    full = lambda shape: pl.BlockSpec(shape, lambda i: (0, 0))

    in_specs = [
        pl.BlockSpec((b_tile, S, E), lambda i: (i, 0, 0)),   # x
        pl.BlockSpec((b_tile, 1, S), lambda i: (i, 0, 0)),   # mask
        full((E, 3 * E)), full((1, 3 * E)),                  # wqkv, bqkv
        full((E, E)), full((1, E)),                          # wo, bo
        full((1, E)), full((1, E)),                          # norm1 gamma, beta
        full((E, F)), full((1, F)),                          # w1, b1
        full((F, E)), full((1, E)),                          # w2, b2
        full((1, E)), full((1, E)),                          # norm2 gamma, beta
    ]

    scratch_shapes = [
        pltpu.VMEM((G, S, D), jnp.float32),   # q heads
        pltpu.VMEM((G, S, D), jnp.float32),   # k heads
        pltpu.VMEM((G, S, D), jnp.float32),   # v heads
        pltpu.VMEM((N, E), jnp.float32),      # merged attention context
    ]

    # Explicit VMEM budget: weights + (double-buffered) activation blocks + scratch.
    def _nbytes(shape, dtype):
        n = 1
        for d in shape:
            n *= int(d)
        return n * jnp.dtype(dtype).itemsize

    blocks = [
        ((b_tile, S, E), x.dtype), ((b_tile, 1, S), mask.dtype),
        (wqkv.shape, wqkv.dtype), (bqkv.shape, bqkv.dtype),
        (wo.shape, wo.dtype), (params["bo"].shape, jnp.float32),
        (params["g1"].shape, jnp.float32), (params["be1"].shape, jnp.float32),
        (w1.shape, w1.dtype), (params["b1"].shape, jnp.float32),
        (w2.shape, w2.dtype), (params["b2"].shape, jnp.float32),
        (params["g2"].shape, jnp.float32), (params["be2"].shape, jnp.float32),
        ((b_tile, S, E), x.dtype),                     # output block
        ((G, S, D), jnp.float32), ((G, S, D), jnp.float32),
        ((G, S, D), jnp.float32), ((N, E), jnp.float32),
    ]
    est = sum(_nbytes(s, d) for s, d in blocks)
    vmem_limit = int(min(64 * 1024 * 1024, max(16 * 1024 * 1024, 2 * est + 4 * 1024 * 1024)))

    kernel = functools.partial(encoder_layer_kernel, num_heads=num_heads, mxu_dtype=mxu_dtype)

    return pl.pallas_call(
        kernel,
        out_shape=jax.ShapeDtypeStruct((B, S, E), x.dtype),
        grid_spec=pltpu.PrefetchScalarGridSpec(
            num_scalar_prefetch=0,
            grid=(B // b_tile,),
            in_specs=in_specs,
            out_specs=pl.BlockSpec((b_tile, S, E), lambda i: (i, 0, 0)),
            scratch_shapes=scratch_shapes,
        ),
        compiler_params=pltpu.CompilerParams(
            dimension_semantics=("parallel",),
            vmem_limit_bytes=vmem_limit,
        ),
    )(
        x, mask, wqkv, bqkv, wo, params["bo"],
        params["g1"], params["be1"],
        w1, params["b1"], w2, params["b2"],
        params["g2"], params["be2"],
    )


def encoder_layer_reference(x, mask, params, *, num_heads):
    """Pure-JAX (f32) reference matching the PyTorch EncoderLayer forward."""
    B, S, E = x.shape
    H = num_heads
    D = E // H

    def ln(v, g, b, eps=1e-5):
        mu = jnp.mean(v, axis=-1, keepdims=True)
        var = jnp.mean((v - mu) ** 2, axis=-1, keepdims=True)
        return (v - mu) * jax.lax.rsqrt(var + eps) * g + b

    q = x @ params["wq"] + params["bq"]
    k = x @ params["wk"] + params["bk"]
    v = x @ params["wv"] + params["bv"]
    qh = q.reshape(B, S, H, D).transpose(0, 2, 1, 3)
    kh = k.reshape(B, S, H, D).transpose(0, 2, 1, 3)
    vh = v.reshape(B, S, H, D).transpose(0, 2, 1, 3)
    s = jnp.einsum("bhqd,bhkd->bhqk", qh, kh) / math.sqrt(D)
    s = jnp.where(mask[:, None, :, :] > 0, s, -1e9)
    p = jax.nn.softmax(s, axis=-1)
    ctx = jnp.einsum("bhqk,bhkd->bhqd", p, vh)
    ctx = ctx.transpose(0, 2, 1, 3).reshape(B, S, E)
    attn = ctx @ params["wo"] + params["bo"]
    x1 = ln(x + attn, params["g1"], params["be1"])
    h1 = jnp.maximum(x1 @ params["w1"] + params["b1"], 0.0)
    ff = h1 @ params["w2"] + params["b2"]
    return ln(x1 + ff, params["g2"], params["be2"])


def init_params(key, emb_dim, ff_dim):
    ks = jax.random.split(key, 8)
    scale_e = 1.0 / math.sqrt(emb_dim)
    scale_f = 1.0 / math.sqrt(ff_dim)
    return {
        "wq": jax.random.normal(ks[0], (emb_dim, emb_dim), jnp.float32) * scale_e,
        "wk": jax.random.normal(ks[1], (emb_dim, emb_dim), jnp.float32) * scale_e,
        "wv": jax.random.normal(ks[2], (emb_dim, emb_dim), jnp.float32) * scale_e,
        "wo": jax.random.normal(ks[3], (emb_dim, emb_dim), jnp.float32) * scale_e,
        "bq": jax.random.normal(ks[4], (1, emb_dim), jnp.float32) * 0.02,
        "bk": jax.random.normal(ks[5], (1, emb_dim), jnp.float32) * 0.02,
        "bv": jnp.zeros((1, emb_dim), jnp.float32),
        "bo": jnp.zeros((1, emb_dim), jnp.float32),
        "g1": jnp.ones((1, emb_dim), jnp.float32),
        "be1": jnp.zeros((1, emb_dim), jnp.float32),
        "w1": jax.random.normal(ks[6], (emb_dim, ff_dim), jnp.float32) * scale_e,
        "b1": jnp.zeros((1, ff_dim), jnp.float32),
        "w2": jax.random.normal(ks[7], (ff_dim, emb_dim), jnp.float32) * scale_f,
        "b2": jnp.zeros((1, emb_dim), jnp.float32),
        "g2": jnp.ones((1, emb_dim), jnp.float32),
        "be2": jnp.zeros((1, emb_dim), jnp.float32),
    }


if __name__ == "__main__":
    B, S, E, H, F = 4, 8, 32, 4, 64   # batch, seq, emb_dim, num_heads, ff_dim

    key = jax.random.PRNGKey(0)
    kx, kp = jax.random.split(key)

    x = jax.random.normal(kx, (B, S, E), jnp.float32)
    # key-padding style mask: some batches have trailing key positions masked
    mask = jnp.ones((B, 1, S), jnp.float32)
    mask = mask.at[1, 0, -2:].set(0.0)
    mask = mask.at[3, 0, -3:].set(0.0)

    params = init_params(kp, E, F)
    ref = encoder_layer_reference(x, mask, params, num_heads=H)

    # f32 MXU path: numerics check against the pure-JAX reference.
    out_f32 = encoder_layer(x, mask, params, num_heads=H, b_tile=2,
                            mxu_dtype=jnp.float32)
    jax.block_until_ready(out_f32)
    assert out_f32.shape == (B, S, E)
    assert bool(jnp.all(jnp.isfinite(out_f32)))
    assert float(jnp.max(jnp.abs(out_f32 - ref))) < 5e-2

    # bf16 MXU path (recommended on v6e/v7x): bf16 inputs, f32 accumulate, f32 softmax/LN.
    out_bf16 = encoder_layer(x, mask, params, num_heads=H, b_tile=2,
                             mxu_dtype=jnp.bfloat16)
    jax.block_until_ready(out_bf16)
    assert out_bf16.shape == (B, S, E)
    assert bool(jnp.all(jnp.isfinite(out_bf16)))
    assert float(jnp.max(jnp.abs(out_bf16 - ref))) < 0.5

    print("KERNEL_OK")
</pallas_src>

<mosaic_0001>
module attributes {stable_mosaic.version = 11 : i64} {
  func.func @encoder_layer_kernel(%arg0: i32, %arg1: memref<2x8x32xf32, #tpu.memory_space<vmem>>, %arg2: memref<2x1x8xf32, #tpu.memory_space<vmem>>, %arg3: memref<32x96xf32, #tpu.memory_space<vmem>>, %arg4: memref<1x96xf32, #tpu.memory_space<vmem>>, %arg5: memref<32x32xf32, #tpu.memory_space<vmem>>, %arg6: memref<1x32xf32, #tpu.memory_space<vmem>>, %arg7: memref<1x32xf32, #tpu.memory_space<vmem>>, %arg8: memref<1x32xf32, #tpu.memory_space<vmem>>, %arg9: memref<32x64xf32, #tpu.memory_space<vmem>>, %arg10: memref<1x64xf32, #tpu.memory_space<vmem>>, %arg11: memref<64x32xf32, #tpu.memory_space<vmem>>, %arg12: memref<1x32xf32, #tpu.memory_space<vmem>>, %arg13: memref<1x32xf32, #tpu.memory_space<vmem>>, %arg14: memref<1x32xf32, #tpu.memory_space<vmem>>, %arg15: memref<2x8x32xf32, #tpu.memory_space<vmem>>, %arg16: memref<8x8x8xf32, #tpu.memory_space<vmem>>, %arg17: memref<8x8x8xf32, #tpu.memory_space<vmem>>, %arg18: memref<8x8x8xf32, #tpu.memory_space<vmem>>, %arg19: memref<16x32xf32, #tpu.memory_space<vmem>>) attributes {dimension_semantics = [#tpu.dimension_semantics<parallel>], iteration_bounds = array<i64: 2>, scalar_prefetch = 0 : i64, scratch_operands = 4 : i64, tpu.core_type = #tpu.core_type<tc>, window_params = [{transform_indices = @transform_0, window_bounds = array<i64: 2, 8, 32>}, {transform_indices = @transform_1, window_bounds = array<i64: 2, 1, 8>}, {pipeline_mode = #tpu.pipeline_mode<synchronous>, transform_indices = @transform_2, window_bounds = array<i64: 32, 96>}, {pipeline_mode = #tpu.pipeline_mode<synchronous>, transform_indices = @transform_3, window_bounds = array<i64: 1, 96>}, {pipeline_mode = #tpu.pipeline_mode<synchronous>, transform_indices = @transform_4, window_bounds = array<i64: 32, 32>}, {pipeline_mode = #tpu.pipeline_mode<synchronous>, transform_indices = @transform_5, window_bounds = array<i64: 1, 32>}, {pipeline_mode = #tpu.pipeline_mode<synchronous>, transform_indices = @transform_6, window_bounds = array<i64: 1, 32>}, {pipeline_mode = #tpu.pipeline_mode<synchronous>, transform_indices = @transform_7, window_bounds = array<i64: 1, 32>}, {pipeline_mode = #tpu.pipeline_mode<synchronous>, transform_indices = @transform_8, window_bounds = array<i64: 32, 64>}, {pipeline_mode = #tpu.pipeline_mode<synchronous>, transform_indices = @transform_9, window_bounds = array<i64: 1, 64>}, {pipeline_mode = #tpu.pipeline_mode<synchronous>, transform_indices = @transform_10, window_bounds = array<i64: 64, 32>}, {pipeline_mode = #tpu.pipeline_mode<synchronous>, transform_indices = @transform_11, window_bounds = array<i64: 1, 32>}, {pipeline_mode = #tpu.pipeline_mode<synchronous>, transform_indices = @transform_12, window_bounds = array<i64: 1, 32>}, {pipeline_mode = #tpu.pipeline_mode<synchronous>, transform_indices = @transform_13, window_bounds = array<i64: 1, 32>}, {transform_indices = @transform_14, window_bounds = array<i64: 2, 8, 32>}]} {
    %c0 = arith.constant 0 : index
    %c0_0 = arith.constant 0 : index
    %c0_1 = arith.constant 0 : index
    %0 = vector.load %arg1[%c0, %c0_0, %c0_1] : memref<2x8x32xf32, #tpu.memory_space<vmem>>, vector<2x8x32xf32>
    %1 = vector.shape_cast %0 : vector<2x8x32xf32> to vector<16x32xf32>
    %c0_2 = arith.constant 0 : index
    %c0_3 = arith.constant 0 : index
    %2 = vector.load %arg3[%c0_2, %c0_3] : memref<32x96xf32, #tpu.memory_space<vmem>>, vector<32x96xf32>
    %cst = arith.constant dense<0.000000e+00> : vector<16x96xf32>
    %3 = tpu.matmul %1, %2, %cst {dimension_numbers = #tpu.dot_dimension_numbers<[1], [0], [0], [1], [0, 0, 1, 1], [], []>} : vector<16x32xf32>, vector<32x96xf32>, vector<16x96xf32> -> vector<16x96xf32>
    %c0_4 = arith.constant 0 : index
    %c0_5 = arith.constant 0 : index
    %4 = vector.load %arg4[%c0_4, %c0_5] : memref<1x96xf32, #tpu.memory_space<vmem>>, vector<1x96xf32>
    %5 = vector.broadcast %4 : vector<1x96xf32> to vector<16x96xf32>
    %6 = arith.addf %3, %5 : vector<16x96xf32>
    %7 = vector.extract_strided_slice %6 {offsets = [0, 0], sizes = [8, 8], strides = [1, 1]} : vector<16x96xf32> to vector<8x8xf32>
    %c0_6 = arith.constant 0 : index
    %c0_7 = arith.constant 0 : index
    %c0_8 = arith.constant 0 : index
    %8 = vector.load %arg16[%c0_6, %c0_7, %c0_8] : memref<8x8x8xf32, #tpu.memory_space<vmem>>, vector<1x8x8xf32>
    %9 = vector.shape_cast %8 : vector<1x8x8xf32> to vector<8x8xf32>
    %10 = vector.shape_cast %7 : vector<8x8xf32> to vector<1x8x8xf32>
    tpu.vector_store %arg16[%c0_6, %c0_7, %c0_8], %10 {strides = array<i32>} : memref<8x8x8xf32, #tpu.memory_space<vmem>>, vector<1x8x8xf32>,
    %11 = vector.extract_strided_slice %6 {offsets = [0, 32], sizes = [8, 8], strides = [1, 1]} : vector<16x96xf32> to vector<8x8xf32>
    %c0_9 = arith.constant 0 : index
    %c0_10 = arith.constant 0 : index
    %c0_11 = arith.constant 0 : index
    %12 = vector.load %arg17[%c0_9, %c0_10, %c0_11] : memref<8x8x8xf32, #tpu.memory_space<vmem>>, vector<1x8x8xf32>
    %13 = vector.shape_cast %12 : vector<1x8x8xf32> to vector<8x8xf32>
    %14 = vector.shape_cast %11 : vector<8x8xf32> to vector<1x8x8xf32>
    tpu.vector_store %arg17[%c0_9, %c0_10, %c0_11], %14 {strides = array<i32>} : memref<8x8x8xf32, #tpu.memory_space<vmem>>, vector<1x8x8xf32>,
    %15 = vector.extract_strided_slice %6 {offsets = [0, 64], sizes = [8, 8], strides = [1, 1]} : vector<16x96xf32> to vector<8x8xf32>
    %c0_12 = arith.constant 0 : index
    %c0_13 = arith.constant 0 : index
    %c0_14 = arith.constant 0 : index
    %16 = vector.load %arg18[%c0_12, %c0_13, %c0_14] : memref<8x8x8xf32, #tpu.memory_space<vmem>>, vector<1x8x8xf32>
    %17 = vector.shape_cast %16 : vector<1x8x8xf32> to vector<8x8xf32>
    %18 = vector.shape_cast %15 : vector<8x8xf32> to vector<1x8x8xf32>
    tpu.vector_store %arg18[%c0_12, %c0_13, %c0_14], %18 {strides = array<i32>} : memref<8x8x8xf32, #tpu.memory_space<vmem>>, vector<1x8x8xf32>,
    %19 = vector.extract_strided_slice %6 {offsets = [8, 0], sizes = [8, 8], strides = [1, 1]} : vector<16x96xf32> to vector<8x8xf32>
    %c1 = arith.constant 1 : index
    %c0_15 = arith.constant 0 : index
    %c0_16 = arith.constant 0 : index
    %20 = vector.load %arg16[%c1, %c0_15, %c0_16] : memref<8x8x8xf32, #tpu.memory_space<vmem>>, vector<1x8x8xf32>
    %21 = vector.shape_cast %20 : vector<1x8x8xf32> to vector<8x8xf32>
    %22 = vector.shape_cast %19 : vector<8x8xf32> to vector<1x8x8xf32>
    tpu.vector_store %arg16[%c1, %c0_15, %c0_16], %22 {strides = array<i32>} : memref<8x8x8xf32, #tpu.memory_space<vmem>>, vector<1x8x8xf32>,
    %23 = vector.extract_strided_slice %6 {offsets = [8, 32], sizes = [8, 8], strides = [1, 1]} : vector<16x96xf32> to vector<8x8xf32>
    %c1_17 = arith.constant 1 : index
    %c0_18 = arith.constant 0 : index
    %c0_19 = arith.constant 0 : index
    %24 = vector.load %arg17[%c1_17, %c0_18, %c0_19] : memref<8x8x8xf32, #tpu.memory_space<vmem>>, vector<1x8x8xf32>
    %25 = vector.shape_cast %24 : vector<1x8x8xf32> to vector<8x8xf32>
    %26 = vector.shape_cast %23 : vector<8x8xf32> to vector<1x8x8xf32>
    tpu.vector_store %arg17[%c1_17, %c0_18, %c0_19], %26 {strides = array<i32>} : memref<8x8x8xf32, #tpu.memory_space<vmem>>, vector<1x8x8xf32>,
    %27 = vector.extract_strided_slice %6 {offsets = [8, 64], sizes = [8, 8], strides = [1, 1]} : vector<16x96xf32> to vector<8x8xf32>
    %c1_20 = arith.constant 1 : index
    %c0_21 = arith.constant 0 : index
    %c0_22 = arith.constant 0 : index
    %28 = vector.load %arg18[%c1_20, %c0_21, %c0_22] : memref<8x8x8xf32, #tpu.memory_space<vmem>>, vector<1x8x8xf32>
    %29 = vector.shape_cast %28 : vector<1x8x8xf32> to vector<8x8xf32>
    %30 = vector.shape_cast %27 : vector<8x8xf32> to vector<1x8x8xf32>
    tpu.vector_store %arg18[%c1_20, %c0_21, %c0_22], %30 {strides = array<i32>} : memref<8x8x8xf32, #tpu.memory_space<vmem>>, vector<1x8x8xf32>,
    %31 = vector.extract_strided_slice %6 {offsets = [0, 8], sizes = [8, 8], strides = [1, 1]} : vector<16x96xf32> to vector<8x8xf32>
    %c2 = arith.constant 2 : index
    %c0_23 = arith.constant 0 : index
    %c0_24 = arith.constant 0 : index
    %32 = vector.load %arg16[%c2, %c0_23, %c0_24] : memref<8x8x8xf32, #tpu.memory_space<vmem>>, vector<1x8x8xf32>
    %33 = vector.shape_cast %32 : vector<1x8x8xf32> to vector<8x8xf32>
    %34 = vector.shape_cast %31 : vector<8x8xf32> to vector<1x8x8xf32>
    tpu.vector_store %arg16[%c2, %c0_23, %c0_24], %34 {strides = array<i32>} : memref<8x8x8xf32, #tpu.memory_space<vmem>>, vector<1x8x8xf32>,
    %35 = vector.extract_strided_slice %6 {offsets = [0, 40], sizes = [8, 8], strides = [1, 1]} : vector<16x96xf32> to vector<8x8xf32>
    %c2_25 = arith.constant 2 : index
    %c0_26 = arith.constant 0 : index
    %c0_27 = arith.constant 0 : index
    %36 = vector.load %arg17[%c2_25, %c0_26, %c0_27] : memref<8x8x8xf32, #tpu.memory_space<vmem>>, vector<1x8x8xf32>
    %37 = vector.shape_cast %36 : vector<1x8x8xf32> to vector<8x8xf32>
    %38 = vector.shape_cast %35 : vector<8x8xf32> to vector<1x8x8xf32>
    tpu.vector_store %arg17[%c2_25, %c0_26, %c0_27], %38 {strides = array<i32>} : memref<8x8x8xf32, #tpu.memory_space<vmem>>, vector<1x8x8xf32>,
    %39 = vector.extract_strided_slice %6 {offsets = [0, 72], sizes = [8, 8], strides = [1, 1]} : vector<16x96xf32> to vector<8x8xf32>
    %c2_28 = arith.constant 2 : index
    %c0_29 = arith.constant 0 : index
    %c0_30 = arith.constant 0 : index
    %40 = vector.load %arg18[%c2_28, %c0_29, %c0_30] : memref<8x8x8xf32, #tpu.memory_space<vmem>>, vector<1x8x8xf32>
    %41 = vector.shape_cast %40 : vector<1x8x8xf32> to vector<8x8xf32>
    %42 = vector.shape_cast %39 : vector<8x8xf32> to vector<1x8x8xf32>
    tpu.vector_store %arg18[%c2_28, %c0_29, %c0_30], %42 {strides = array<i32>} : memref<8x8x8xf32, #tpu.memory_space<vmem>>, vector<1x8x8xf32>,
    %43 = vector.extract_strided_slice %6 {offsets = [8, 8], sizes = [8, 8], strides = [1, 1]} : vector<16x96xf32> to vector<8x8xf32>
    %c3 = arith.constant 3 : index
    %c0_31 = arith.constant 0 : index
    %c0_32 = arith.constant 0 : index
    %44 = vector.load %arg16[%c3, %c0_31, %c0_32] : memref<8x8x8xf32, #tpu.memory_space<vmem>>, vector<1x8x8xf32>
    %45 = vector.shape_cast %44 : vector<1x8x8xf32> to vector<8x8xf32>
    %46 = vector.shape_cast %43 : vector<8x8xf32> to vector<1x8x8xf32>
    tpu.vector_store %arg16[%c3, %c0_31, %c0_32], %46 {strides = array<i32>} : memref<8x8x8xf32, #tpu.memory_space<vmem>>, vector<1x8x8xf32>,
    %47 = vector.extract_strided_slice %6 {offsets = [8, 40], sizes = [8, 8], strides = [1, 1]} : vector<16x96xf32> to vector<8x8xf32>
    %c3_33 = arith.constant 3 : index
    %c0_34 = arith.constant 0 : index
    %c0_35 = arith.constant 0 : index
    %48 = vector.load %arg17[%c3_33, %c0_34, %c0_35] : memref<8x8x8xf32, #tpu.memory_space<vmem>>, vector<1x8x8xf32>
    %49 = vector.shape_cast %48 : vector<1x8x8xf32> to vector<8x8xf32>
    %50 = vector.shape_cast %47 : vector<8x8xf32> to vector<1x8x8xf32>
    tpu.vector_store %arg17[%c3_33, %c0_34, %c0_35], %50 {strides = array<i32>} : memref<8x8x8xf32, #tpu.memory_space<vmem>>, vector<1x8x8xf32>,
    %51 = vector.extract_strided_slice %6 {offsets = [8, 72], sizes = [8, 8], strides = [1, 1]} : vector<16x96xf32> to vector<8x8xf32>
    %c3_36 = arith.constant 3 : index
    %c0_37 = arith.constant 0 : index
    %c0_38 = arith.constant 0 : index
    %52 = vector.load %arg18[%c3_36, %c0_37, %c0_38] : memref<8x8x8xf32, #tpu.memory_space<vmem>>, vector<1x8x8xf32>
    %53 = vector.shape_cast %52 : vector<1x8x8xf32> to vector<8x8xf32>
    %54 = vector.shape_cast %51 : vector<8x8xf32> to vector<1x8x8xf32>
    tpu.vector_store %arg18[%c3_36, %c0_37, %c0_38], %54 {strides = array<i32>} : memref<8x8x8xf32, #tpu.memory_space<vmem>>, vector<1x8x8xf32>,
    %55 = vector.extract_strided_slice %6 {offsets = [0, 16], sizes = [8, 8], strides = [1, 1]} : vector<16x96xf32> to vector<8x8xf32>
    %c4 = arith.constant 4 : index
    %c0_39 = arith.constant 0 : index
    %c0_40 = arith.constant 0 : index
    %56 = vector.load %arg16[%c4, %c0_39, %c0_40] : memref<8x8x8xf32, #tpu.memory_space<vmem>>, vector<1x8x8xf32>
    %57 = vector.shape_cast %56 : vector<1x8x8xf32> to vector<8x8xf32>
    %58 = vector.shape_cast %55 : vector<8x8xf32> to vector<1x8x8xf32>
    tpu.vector_store %arg16[%c4, %c0_39, %c0_40], %58 {strides = array<i32>} : memref<8x8x8xf32, #tpu.memory_space<vmem>>, vector<1x8x8xf32>,
    %59 = vector.extract_strided_slice %6 {offsets = [0, 48], sizes = [8, 8], strides = [1, 1]} : vector<16x96xf32> to vector<8x8xf32>
    %c4_41 = arith.constant 4 : index
    %c0_42 = arith.constant 0 : index
    %c0_43 = arith.constant 0 : index
    %60 = vector.load %arg17[%c4_41, %c0_42, %c0_43] : memref<8x8x8xf32, #tpu.memory_space<vmem>>, vector<1x8x8xf32>
    %61 = vector.shape_cast %60 : vector<1x8x8xf32> to vector<8x8xf32>
    %62 = vector.shape_cast %59 : vector<8x8xf32> to vector<1x8x8xf32>
    tpu.vector_store %arg17[%c4_41, %c0_42, %c0_43], %62 {strides = array<i32>} : memref<8x8x8xf32, #tpu.memory_space<vmem>>, vector<1x8x8xf32>,
    %63 = vector.extract_strided_slice %6 {offsets = [0, 80], sizes = [8, 8], strides = [1, 1]} : vector<16x96xf32> to vector<8x8xf32>
    %c4_44 = arith.constant 4 : index
    %c0_45 = arith.constant 0 : index
    %c0_46 = arith.constant 0 : index
    %64 = vector.load %arg18[%c4_44, %c0_45, %c0_46] : memref<8x8x8xf32, #tpu.memory_space<vmem>>, vector<1x8x8xf32>
    %65 = vector.shape_cast %64 : vector<1x8x8xf32> to vector<8x8xf32>
    %66 = vector.shape_cast %63 : vector<8x8xf32> to vector<1x8x8xf32>
    tpu.vector_store %arg18[%c4_44, %c0_45, %c0_46], %66 {strides = array<i32>} : memref<8x8x8xf32, #tpu.memory_space<vmem>>, vector<1x8x8xf32>,
    %67 = vector.extract_strided_slice %6 {offsets = [8, 16], sizes = [8, 8], strides = [1, 1]} : vector<16x96xf32> to vector<8x8xf32>
    %c5 = arith.constant 5 : index
    %c0_47 = arith.constant 0 : index
    %c0_48 = arith.constant 0 : index
    %68 = vector.load %arg16[%c5, %c0_47, %c0_48] : memref<8x8x8xf32, #tpu.memory_space<vmem>>, vector<1x8x8xf32>
    %69 = vector.shape_cast %68 : vector<1x8x8xf32> to vector<8x8xf32>
    %70 = vector.shape_cast %67 : vector<8x8xf32> to vector<1x8x8xf32>
    tpu.vector_store %arg16[%c5, %c0_47, %c0_48], %70 {strides = array<i32>} : memref<8x8x8xf32, #tpu.memory_space<vmem>>, vector<1x8x8xf32>,
    %71 = vector.extract_strided_slice %6 {offsets = [8, 48], sizes = [8, 8], strides = [1, 1]} : vector<16x96xf32> to vector<8x8xf32>
    %c5_49 = arith.constant 5 : index
    %c0_50 = arith.constant 0 : index
    %c0_51 = arith.constant 0 : index
    %72 = vector.load %arg17[%c5_49, %c0_50, %c0_51] : memref<8x8x8xf32, #tpu.memory_space<vmem>>, vector<1x8x8xf32>
    %73 = vector.shape_cast %72 : vector<1x8x8xf32> to vector<8x8xf32>
    %74 = vector.shape_cast %71 : vector<8x8xf32> to vector<1x8x8xf32>
    tpu.vector_store %arg17[%c5_49, %c0_50, %c0_51], %74 {strides = array<i32>} : memref<8x8x8xf32, #tpu.memory_space<vmem>>, vector<1x8x8xf32>,
    %75 = vector.extract_strided_slice %6 {offsets = [8, 80], sizes = [8, 8], strides = [1, 1]} : vector<16x96xf32> to vector<8x8xf32>
    %c5_52 = arith.constant 5 : index
    %c0_53 = arith.constant 0 : index
    %c0_54 = arith.constant 0 : index
    %76 = vector.load %arg18[%c5_52, %c0_53, %c0_54] : memref<8x8x8xf32, #tpu.memory_space<vmem>>, vector<1x8x8xf32>
    %77 = vector.shape_cast %76 : vector<1x8x8xf32> to vector<8x8xf32>
    %78 = vector.shape_cast %75 : vector<8x8xf32> to vector<1x8x8xf32>
    tpu.vector_store %arg18[%c5_52, %c0_53, %c0_54], %78 {strides = array<i32>} : memref<8x8x8xf32, #tpu.memory_space<vmem>>, vector<1x8x8xf32>,
    %79 = vector.extract_strided_slice %6 {offsets = [0, 24], sizes = [8, 8], strides = [1, 1]} : vector<16x96xf32> to vector<8x8xf32>
    %c6 = arith.constant 6 : index
    %c0_55 = arith.constant 0 : index
    %c0_56 = arith.constant 0 : index
    %80 = vector.load %arg16[%c6, %c0_55, %c0_56] : memref<8x8x8xf32, #tpu.memory_space<vmem>>, vector<1x8x8xf32>
    %81 = vector.shape_cast %80 : vector<1x8x8xf32> to vector<8x8xf32>
    %82 = vector.shape_cast %79 : vector<8x8xf32> to vector<1x8x8xf32>
    tpu.vector_store %arg16[%c6, %c0_55, %c0_56], %82 {strides = array<i32>} : memref<8x8x8xf32, #tpu.memory_space<vmem>>, vector<1x8x8xf32>,
    %83 = vector.extract_strided_slice %6 {offsets = [0, 56], sizes = [8, 8], strides = [1, 1]} : vector<16x96xf32> to vector<8x8xf32>
    %c6_57 = arith.constant 6 : index
    %c0_58 = arith.constant 0 : index
    %c0_59 = arith.constant 0 : index
    %84 = vector.load %arg17[%c6_57, %c0_58, %c0_59] : memref<8x8x8xf32, #tpu.memory_space<vmem>>, vector<1x8x8xf32>
    %85 = vector.shape_cast %84 : vector<1x8x8xf32> to vector<8x8xf32>
    %86 = vector.shape_cast %83 : vector<8x8xf32> to vector<1x8x8xf32>
    tpu.vector_store %arg17[%c6_57, %c0_58, %c0_59], %86 {strides = array<i32>} : memref<8x8x8xf32, #tpu.memory_space<vmem>>, vector<1x8x8xf32>,
    %87 = vector.extract_strided_slice %6 {offsets = [0, 88], sizes = [8, 8], strides = [1, 1]} : vector<16x96xf32> to vector<8x8xf32>
    %c6_60 = arith.constant 6 : index
    %c0_61 = arith.constant 0 : index
    %c0_62 = arith.constant 0 : index
    %88 = vector.load %arg18[%c6_60, %c0_61, %c0_62] : memref<8x8x8xf32, #tpu.memory_space<vmem>>, vector<1x8x8xf32>
    %89 = vector.shape_cast %88 : vector<1x8x8xf32> to vector<8x8xf32>
    %90 = vector.shape_cast %87 : vector<8x8xf32> to vector<1x8x8xf32>
    tpu.vector_store %arg18[%c6_60, %c0_61, %c0_62], %90 {strides = array<i32>} : memref<8x8x8xf32, #tpu.memory_space<vmem>>, vector<1x8x8xf32>,
    %91 = vector.extract_strided_slice %6 {offsets = [8, 24], sizes = [8, 8], strides = [1, 1]} : vector<16x96xf32> to vector<8x8xf32>
    %c7 = arith.constant 7 : index
    %c0_63 = arith.constant 0 : index
    %c0_64 = arith.constant 0 : index
    %92 = vector.load %arg16[%c7, %c0_63, %c0_64] : memref<8x8x8xf32, #tpu.memory_space<vmem>>, vector<1x8x8xf32>
    %93 = vector.shape_cast %92 : vector<1x8x8xf32> to vector<8x8xf32>
    %94 = vector.shape_cast %91 : vector<8x8xf32> to vector<1x8x8xf32>
    tpu.vector_store %arg16[%c7, %c0_63, %c0_64], %94 {strides = array<i32>} : memref<8x8x8xf32, #tpu.memory_space<vmem>>, vector<1x8x8xf32>,
    %95 = vector.extract_strided_slice %6 {offsets = [8, 56], sizes = [8, 8], strides = [1, 1]} : vector<16x96xf32> to vector<8x8xf32>
    %c7_65 = arith.constant 7 : index
    %c0_66 = arith.constant 0 : index
    %c0_67 = arith.constant 0 : index
    %96 = vector.load %arg17[%c7_65, %c0_66, %c0_67] : memref<8x8x8xf32, #tpu.memory_space<vmem>>, vector<1x8x8xf32>
    %97 = vector.shape_cast %96 : vector<1x8x8xf32> to vector<8x8xf32>
    %98 = vector.shape_cast %95 : vector<8x8xf32> to vector<1x8x8xf32>
    tpu.vector_store %arg17[%c7_65, %c0_66, %c0_67], %98 {strides = array<i32>} : memref<8x8x8xf32, #tpu.memory_space<vmem>>, vector<1x8x8xf32>,
    %99 = vector.extract_strided_slice %6 {offsets = [8, 88], sizes = [8, 8], strides = [1, 1]} : vector<16x96xf32> to vector<8x8xf32>
    %c7_68 = arith.constant 7 : index
    %c0_69 = arith.constant 0 : index
    %c0_70 = arith.constant 0 : index
    %100 = vector.load %arg18[%c7_68, %c0_69, %c0_70] : memref<8x8x8xf32, #tpu.memory_space<vmem>>, vector<1x8x8xf32>
    %101 = vector.shape_cast %100 : vector<1x8x8xf32> to vector<8x8xf32>
    %102 = vector.shape_cast %99 : vector<8x8xf32> to vector<1x8x8xf32>
    tpu.vector_store %arg18[%c7_68, %c0_69, %c0_70], %102 {strides = array<i32>} : memref<8x8x8xf32, #tpu.memory_space<vmem>>, vector<1x8x8xf32>,
    %c0_71 = arith.constant 0 : index
    %c0_72 = arith.constant 0 : index
    %c0_73 = arith.constant 0 : index
    %103 = vector.load %arg16[%c0_71, %c0_72, %c0_73] : memref<8x8x8xf32, #tpu.memory_space<vmem>>, vector<8x8x8xf32>
    %c0_74 = arith.constant 0 : index
    %c0_75 = arith.constant 0 : index
    %c0_76 = arith.constant 0 : index
    %104 = vector.load %arg17[%c0_74, %c0_75, %c0_76] : memref<8x8x8xf32, #tpu.memory_space<vmem>>, vector<8x8x8xf32>
    %c0_77 = arith.constant 0 : index
    %c0_78 = arith.constant 0 : index
    %c0_79 = arith.constant 0 : index
    %105 = vector.load %arg18[%c0_77, %c0_78, %c0_79] : memref<8x8x8xf32, #tpu.memory_space<vmem>>, vector<8x8x8xf32>
    "tpu.trace_start"() <{level = 10 : i32, message = "gqd,gkd->gqk"}> : () -> ()
    %cst_80 = arith.constant dense<0.000000e+00> : vector<8x8x8xf32>
    %106 = tpu.matmul %103, %104, %cst_80 {dimension_numbers = #tpu.dot_dimension_numbers<[2], [2], [1], [1], [0, 0, 0, 1, 1, 1], [0], [0]>} : vector<8x8x8xf32>, vector<8x8x8xf32>, vector<8x8x8xf32> -> vector<8x8x8xf32>
    "tpu.trace_stop"() : () -> ()
    %cst_81 = arith.constant 0.353553385 : f32
    %107 = vector.broadcast %cst_81 : f32 to vector<8x8x8xf32>
    %108 = arith.mulf %106, %107 : vector<8x8x8xf32>
    %c0_82 = arith.constant 0 : index
    %c0_83 = arith.constant 0 : index
    %c0_84 = arith.constant 0 : index
    %109 = vector.load %arg2[%c0_82, %c0_83, %c0_84] : memref<2x1x8xf32, #tpu.memory_space<vmem>>, vector<2x1x8xf32>
    %cst_85 = arith.constant 0.000000e+00 : f32
    %110 = vector.broadcast %cst_85 : f32 to vector<2x1x8xf32>
    %111 = arith.cmpf ogt, %109, %110 : vector<2x1x8xf32>
    %cst_86 = arith.constant 0.000000e+00 : f32
    %cst_87 = arith.constant -1.000000e+09 : f32
    %112 = vector.broadcast %cst_86 : f32 to vector<2x1x8xf32>
    %113 = vector.broadcast %cst_87 : f32 to vector<2x1x8xf32>
    %114 = arith.select %111, %112, %113 : vector<2x1x8xi1>, vector<2x1x8xf32>
    %115 = vector.shape_cast %114 : vector<2x1x8xf32> to vector<1x2x1x8xf32>
    %116 = vector.shape_cast %115 : vector<1x2x1x8xf32> to vector<1x2x1x8xf32>
    %117 = vector.broadcast %116 : vector<1x2x1x8xf32> to vector<4x2x1x8xf32>
    %118 = vector.shape_cast %117 : vector<4x2x1x8xf32> to vector<8x1x8xf32>
    %119 = vector.broadcast %118 : vector<8x1x8xf32> to vector<8x8x8xf32>
    %120 = arith.addf %108, %119 : vector<8x8x8xf32>
    %cst_88 = arith.constant dense<0xFF800000> : vector<8x8xf32>
    %121 = vector.multi_reduction <maximumf>, %120, %cst_88 [2] : vector<8x8x8xf32> to vector<8x8xf32>
    %122 = vector.shape_cast %121 : vector<8x8xf32> to vector<8x8x1xf32>
    %123 = vector.broadcast %122 : vector<8x8x1xf32> to vector<8x8x8xf32>
    %124 = arith.subf %120, %123 : vector<8x8x8xf32>
    %125 = math.exp %124 : vector<8x8x8xf32>
    %cst_89 = arith.constant dense<0.000000e+00> : vector<8x8xf32>
    %126 = vector.multi_reduction <add>, %125, %cst_89 [2] : vector<8x8x8xf32> to vector<8x8xf32>
    %127 = vector.shape_cast %126 : vector<8x8xf32> to vector<8x8x1xf32>
    %128 = tpu.reciprocal %127 {approx = true} : vector<8x8x1xf32> -> vector<8x8x1xf32>
    %129 = vector.broadcast %128 : vector<8x8x1xf32> to vector<8x8x8xf32>
    %130 = arith.mulf %125, %129 : vector<8x8x8xf32>
    "tpu.trace_start"() <{level = 10 : i32, message = "gqk,gkd->gqd"}> : () -> ()
    %cst_90 = arith.constant dense<0.000000e+00> : vector<8x8x8xf32>
    %131 = tpu.matmul %130, %105, %cst_90 {dimension_numbers = #tpu.dot_dimension_numbers<[2], [1], [1], [2], [0, 0, 0, 1, 1, 2], [0], [0]>} : vector<8x8x8xf32>, vector<8x8x8xf32>, vector<8x8x8xf32> -> vector<8x8x8xf32>
    "tpu.trace_stop"() : () -> ()
    %132 = vector.extract_strided_slice %131 {offsets = [0, 0, 0], sizes = [1, 8, 8], strides = [1, 1, 1]} : vector<8x8x8xf32> to vector<1x8x8xf32>
    %133 = vector.shape_cast %132 : vector<1x8x8xf32> to vector<8x8xf32>
    %c0_91 = arith.constant 0 : index
    %c0_92 = arith.constant 0 : index
    %134 = vector.load %arg19[%c0_91, %c0_92] : memref<16x32xf32, #tpu.memory_space<vmem>>, vector<8x8xf32>
    tpu.vector_store %arg19[%c0_91, %c0_92], %133 {strides = array<i32>} : memref<16x32xf32, #tpu.memory_space<vmem>>, vector<8x8xf32>,
    %135 = vector.extract_strided_slice %131 {offsets = [1, 0, 0], sizes = [1, 8, 8], strides = [1, 1, 1]} : vector<8x8x8xf32> to vector<1x8x8xf32>
    %136 = vector.shape_cast %135 : vector<1x8x8xf32> to vector<8x8xf32>
    %c8 = arith.constant 8 : index
    %c0_93 = arith.constant 0 : index
    %137 = vector.load %arg19[%c8, %c0_93] : memref<16x32xf32, #tpu.memory_space<vmem>>, vector<8x8xf32>
    tpu.vector_store %arg19[%c8, %c0_93], %136 {strides = array<i32>} : memref<16x32xf32, #tpu.memory_space<vmem>>, vector<8x8xf32>,
    %138 = vector.extract_strided_slice %131 {offsets = [2, 0, 0], sizes = [1, 8, 8], strides = [1, 1, 1]} : vector<8x8x8xf32> to vector<1x8x8xf32>
    %139 = vector.shape_cast %138 : vector<1x8x8xf32> to vector<8x8xf32>
    %c0_94 = arith.constant 0 : index
    %c8_95 = arith.constant 8 : index
    %140 = vector.load %arg19[%c0_94, %c8_95] : memref<16x32xf32, #tpu.memory_space<vmem>>, vector<8x8xf32>
    tpu.vector_store %arg19[%c0_94, %c8_95], %139 {strides = array<i32>} : memref<16x32xf32, #tpu.memory_space<vmem>>, vector<8x8xf32>,
    %141 = vector.extract_strided_slice %131 {offsets = [3, 0, 0], sizes = [1, 8, 8], strides = [1, 1, 1]} : vector<8x8x8xf32> to vector<1x8x8xf32>
    %142 = vector.shape_cast %141 : vector<1x8x8xf32> to vector<8x8xf32>
    %c8_96 = arith.constant 8 : index
    %c8_97 = arith.constant 8 : index
    %143 = vector.load %arg19[%c8_96, %c8_97] : memref<16x32xf32, #tpu.memory_space<vmem>>, vector<8x8xf32>
    tpu.vector_store %arg19[%c8_96, %c8_97], %142 {strides = array<i32>} : memref<16x32xf32, #tpu.memory_space<vmem>>, vector<8x8xf32>,
    %144 = vector.extract_strided_slice %131 {offsets = [4, 0, 0], sizes = [1, 8, 8], strides = [1, 1, 1]} : vector<8x8x8xf32> to vector<1x8x8xf32>
    %145 = vector.shape_cast %144 : vector<1x8x8xf32> to vector<8x8xf32>
    %c0_98 = arith.constant 0 : index
    %c16 = arith.constant 16 : index
    %146 = vector.load %arg19[%c0_98, %c16] : memref<16x32xf32, #tpu.memory_space<vmem>>, vector<8x8xf32>
    tpu.vector_store %arg19[%c0_98, %c16], %145 {strides = array<i32>} : memref<16x32xf32, #tpu.memory_space<vmem>>, vector<8x8xf32>,
    %147 = vector.extract_strided_slice %131 {offsets = [5, 0, 0], sizes = [1, 8, 8], strides = [1, 1, 1]} : vector<8x8x8xf32> to vector<1x8x8xf32>
    %148 = vector.shape_cast %147 : vector<1x8x8xf32> to vector<8x8xf32>
    %c8_99 = arith.constant 8 : index
    %c16_100 = arith.constant 16 : index
    %149 = vector.load %arg19[%c8_99, %c16_100] : memref<16x32xf32, #tpu.memory_space<vmem>>, vector<8x8xf32>
    tpu.vector_store %arg19[%c8_99, %c16_100], %148 {strides = array<i32>} : memref<16x32xf32, #tpu.memory_space<vmem>>, vector<8x8xf32>,
    %150 = vector.extract_strided_slice %131 {offsets = [6, 0, 0], sizes = [1, 8, 8], strides = [1, 1, 1]} : vector<8x8x8xf32> to vector<1x8x8xf32>
    %151 = vector.shape_cast %150 : vector<1x8x8xf32> to vector<8x8xf32>
    %c0_101 = arith.constant 0 : index
    %c24 = arith.constant 24 : index
    %152 = vector.load %arg19[%c0_101, %c24] : memref<16x32xf32, #tpu.memory_space<vmem>>, vector<8x8xf32>
    tpu.vector_store %arg19[%c0_101, %c24], %151 {strides = array<i32>} : memref<16x32xf32, #tpu.memory_space<vmem>>, vector<8x8xf32>,
    %153 = vector.extract_strided_slice %131 {offsets = [7, 0, 0], sizes = [1, 8, 8], strides = [1, 1, 1]} : vector<8x8x8xf32> to vector<1x8x8xf32>
    %154 = vector.shape_cast %153 : vector<1x8x8xf32> to vector<8x8xf32>
    %c8_102 = arith.constant 8 : index
    %c24_103 = arith.constant 24 : index
    %155 = vector.load %arg19[%c8_102, %c24_103] : memref<16x32xf32, #tpu.memory_space<vmem>>, vector<8x8xf32>
    tpu.vector_store %arg19[%c8_102, %c24_103], %154 {strides = array<i32>} : memref<16x32xf32, #tpu.memory_space<vmem>>, vector<8x8xf32>,
    %c0_104 = arith.constant 0 : index
    %c0_105 = arith.constant 0 : index
    %156 = vector.load %arg19[%c0_104, %c0_105] : memref<16x32xf32, #tpu.memory_space<vmem>>, vector<16x32xf32>
    %c0_106 = arith.constant 0 : index
    %c0_107 = arith.constant 0 : index
    %157 = vector.load %arg5[%c0_106, %c0_107] : memref<32x32xf32, #tpu.memory_space<vmem>>, vector<32x32xf32>
    %cst_108 = arith.constant dense<0.000000e+00> : vector<16x32xf32>
    %158 = tpu.matmul %156, %157, %cst_108 {dimension_numbers = #tpu.dot_dimension_numbers<[1], [0], [0], [1], [0, 0, 1, 1], [], []>} : vector<16x32xf32>, vector<32x32xf32>, vector<16x32xf32> -> vector<16x32xf32>
    %c0_109 = arith.constant 0 : index
    %c0_110 = arith.constant 0 : index
    %159 = vector.load %arg6[%c0_109, %c0_110] : memref<1x32xf32, #tpu.memory_space<vmem>>, vector<1x32xf32>
    %160 = vector.broadcast %159 : vector<1x32xf32> to vector<16x32xf32>
    %161 = arith.addf %158, %160 : vector<16x32xf32>
    %162 = arith.addf %161, %1 : vector<16x32xf32>
    %c0_111 = arith.constant 0 : index
    %c0_112 = arith.constant 0 : index
    %163 = vector.load %arg7[%c0_111, %c0_112] : memref<1x32xf32, #tpu.memory_space<vmem>>, vector<1x32xf32>
    %c0_113 = arith.constant 0 : index
    %c0_114 = arith.constant 0 : index
    %164 = vector.load %arg8[%c0_113, %c0_114] : memref<1x32xf32, #tpu.memory_space<vmem>>, vector<1x32xf32>
    %cst_115 = arith.constant dense<0.000000e+00> : vector<16xf32>
    %165 = vector.multi_reduction <add>, %162, %cst_115 [1] : vector<16x32xf32> to vector<16xf32>
    %166 = vector.shape_cast %165 : vector<16xf32> to vector<16x1xf32>
    %cst_116 = arith.constant 3.200000e+01 : f32
    %167 = vector.broadcast %cst_116 : f32 to vector<16x1xf32>
    %168 = arith.divf %166, %167 : vector<16x1xf32>
    %169 = vector.broadcast %168 : vector<16x1xf32> to vector<16x32xf32>
    %170 = arith.subf %162, %169 : vector<16x32xf32>
    %171 = arith.mulf %170, %170 : vector<16x32xf32>
    %cst_117 = arith.constant dense<0.000000e+00> : vector<16xf32>
    %172 = vector.multi_reduction <add>, %171, %cst_117 [1] : vector<16x32xf32> to vector<16xf32>
    %173 = vector.shape_cast %172 : vector<16xf32> to vector<16x1xf32>
    %cst_118 = arith.constant 3.200000e+01 : f32
    %174 = vector.broadcast %cst_118 : f32 to vector<16x1xf32>
    %175 = arith.divf %173, %174 : vector<16x1xf32>
    %176 = vector.broadcast %168 : vector<16x1xf32> to vector<16x32xf32>
    %177 = arith.subf %162, %176 : vector<16x32xf32>
    %cst_119 = arith.constant 9.99999974E-6 : f32
    %178 = vector.broadcast %cst_119 : f32 to vector<16x1xf32>
    %179 = arith.addf %175, %178 : vector<16x1xf32>
    %180 = math.rsqrt %179 : vector<16x1xf32>
    %181 = vector.broadcast %180 : vector<16x1xf32> to vector<16x32xf32>
    %182 = arith.mulf %177, %181 : vector<16x32xf32>
    %183 = vector.broadcast %163 : vector<1x32xf32> to vector<16x32xf32>
    %184 = arith.mulf %182, %183 : vector<16x32xf32>
    %185 = vector.broadcast %164 : vector<1x32xf32> to vector<16x32xf32>
    %186 = arith.addf %184, %185 : vector<16x32xf32>
    %c0_120 = arith.constant 0 : index
    %c0_121 = arith.constant 0 : index
    %187 = vector.load %arg9[%c0_120, %c0_121] : memref<32x64xf32, #tpu.memory_space<vmem>>, vector<32x64xf32>
    %cst_122 = arith.constant dense<0.000000e+00> : vector<16x64xf32>
    %188 = tpu.matmul %186, %187, %cst_122 {dimension_numbers = #tpu.dot_dimension_numbers<[1], [0], [0], [1], [0, 0, 1, 1], [], []>} : vector<16x32xf32>, vector<32x64xf32>, vector<16x64xf32> -> vector<16x64xf32>
    %c0_123 = arith.constant 0 : index
    %c0_124 = arith.constant 0 : index
    %189 = vector.load %arg10[%c0_123, %c0_124] : memref<1x64xf32, #tpu.memory_space<vmem>>, vector<1x64xf32>
    %190 = vector.broadcast %189 : vector<1x64xf32> to vector<16x64xf32>
    %191 = arith.addf %188, %190 : vector<16x64xf32>
    %cst_125 = arith.constant 0.000000e+00 : f32
    %192 = vector.broadcast %cst_125 : f32 to vector<16x64xf32>
    %193 = arith.maximumf %191, %192 : vector<16x64xf32>
    %c0_126 = arith.constant 0 : index
    %c0_127 = arith.constant 0 : index
    %194 = vector.load %arg11[%c0_126, %c0_127] : memref<64x32xf32, #tpu.memory_space<vmem>>, vector<64x32xf32>
    %cst_128 = arith.constant dense<0.000000e+00> : vector<16x32xf32>
    %195 = tpu.matmul %193, %194, %cst_128 {dimension_numbers = #tpu.dot_dimension_numbers<[1], [0], [0], [1], [0, 0, 1, 1], [], []>} : vector<16x64xf32>, vector<64x32xf32>, vector<16x32xf32> -> vector<16x32xf32>
    %c0_129 = arith.constant 0 : index
    %c0_130 = arith.constant 0 : index
    %196 = vector.load %arg12[%c0_129, %c0_130] : memref<1x32xf32, #tpu.memory_space<vmem>>, vector<1x32xf32>
    %197 = vector.broadcast %196 : vector<1x32xf32> to vector<16x32xf32>
    %198 = arith.addf %195, %197 : vector<16x32xf32>
    %199 = arith.addf %198, %186 : vector<16x32xf32>
    %c0_131 = arith.constant 0 : index
    %c0_132 = arith.constant 0 : index
    %200 = vector.load %arg13[%c0_131, %c0_132] : memref<1x32xf32, #tpu.memory_space<vmem>>, vector<1x32xf32>
    %c0_133 = arith.constant 0 : index
    %c0_134 = arith.constant 0 : index
    %201 = vector.load %arg14[%c0_133, %c0_134] : memref<1x32xf32, #tpu.memory_space<vmem>>, vector<1x32xf32>
    %cst_135 = arith.constant dense<0.000000e+00> : vector<16xf32>
    %202 = vector.multi_reduction <add>, %199, %cst_135 [1] : vector<16x32xf32> to vector<16xf32>
    %203 = vector.shape_cast %202 : vector<16xf32> to vector<16x1xf32>
    %cst_136 = arith.constant 3.200000e+01 : f32
    %204 = vector.broadcast %cst_136 : f32 to vector<16x1xf32>
    %205 = arith.divf %203, %204 : vector<16x1xf32>
    %206 = vector.broadcast %205 : vector<16x1xf32> to vector<16x32xf32>
    %207 = arith.subf %199, %206 : vector<16x32xf32>
    %208 = arith.mulf %207, %207 : vector<16x32xf32>
    %cst_137 = arith.constant dense<0.000000e+00> : vector<16xf32>
    %209 = vector.multi_reduction <add>, %208, %cst_137 [1] : vector<16x32xf32> to vector<16xf32>
    %210 = vector.shape_cast %209 : vector<16xf32> to vector<16x1xf32>
    %cst_138 = arith.constant 3.200000e+01 : f32
    %211 = vector.broadcast %cst_138 : f32 to vector<16x1xf32>
    %212 = arith.divf %210, %211 : vector<16x1xf32>
    %213 = vector.broadcast %205 : vector<16x1xf32> to vector<16x32xf32>
    %214 = arith.subf %199, %213 : vector<16x32xf32>
    %cst_139 = arith.constant 9.99999974E-6 : f32
    %215 = vector.broadcast %cst_139 : f32 to vector<16x1xf32>
    %216 = arith.addf %212, %215 : vector<16x1xf32>
    %217 = math.rsqrt %216 : vector<16x1xf32>
    %218 = vector.broadcast %217 : vector<16x1xf32> to vector<16x32xf32>
    %219 = arith.mulf %214, %218 : vector<16x32xf32>
    %220 = vector.broadcast %200 : vector<1x32xf32> to vector<16x32xf32>
    %221 = arith.mulf %219, %220 : vector<16x32xf32>
    %222 = vector.broadcast %201 : vector<1x32xf32> to vector<16x32xf32>
    %223 = arith.addf %221, %222 : vector<16x32xf32>
    %224 = vector.shape_cast %223 : vector<16x32xf32> to vector<2x8x32xf32>
    %c0_140 = arith.constant 0 : index
    %c0_141 = arith.constant 0 : index
    %c0_142 = arith.constant 0 : index
    %225 = vector.load %arg15[%c0_140, %c0_141, %c0_142] : memref<2x8x32xf32, #tpu.memory_space<vmem>>, vector<2x8x32xf32>
    tpu.vector_store %arg15[%c0_140, %c0_141, %c0_142], %224 {strides = array<i32>} : memref<2x8x32xf32, #tpu.memory_space<vmem>>, vector<2x8x32xf32>,
    return
  }
  func.func @transform_0(%arg0: i32) -> (i32, i32, i32) {
    %c0_i32 = arith.constant 0 : i32
    %c0_i32_0 = arith.constant 0 : i32
    %c0_i32_1 = arith.constant 0 : i32
    return %arg0, %c0_i32, %c0_i32_0 : i32, i32, i32
  }
  func.func @transform_1(%arg0: i32) -> (i32, i32, i32) {
    %c0_i32 = arith.constant 0 : i32
    %c0_i32_0 = arith.constant 0 : i32
    %c0_i32_1 = arith.constant 0 : i32
    return %arg0, %c0_i32, %c0_i32_0 : i32, i32, i32
  }
  func.func @transform_2(%arg0: i32) -> (i32, i32) {
    %c0_i32 = arith.constant 0 : i32
    %c0_i32_0 = arith.constant 0 : i32
    %c0_i32_1 = arith.constant 0 : i32
    return %c0_i32, %c0_i32_0 : i32, i32
  }
  func.func @transform_3(%arg0: i32) -> (i32, i32) {
    %c0_i32 = arith.constant 0 : i32
    %c0_i32_0 = arith.constant 0 : i32
    %c0_i32_1 = arith.constant 0 : i32
    return %c0_i32, %c0_i32_0 : i32, i32
  }
  func.func @transform_4(%arg0: i32) -> (i32, i32) {
    %c0_i32 = arith.constant 0 : i32
    %c0_i32_0 = arith.constant 0 : i32
    %c0_i32_1 = arith.constant 0 : i32
    return %c0_i32, %c0_i32_0 : i32, i32
  }
  func.func @transform_5(%arg0: i32) -> (i32, i32) {
    %c0_i32 = arith.constant 0 : i32
    %c0_i32_0 = arith.constant 0 : i32
    %c0_i32_1 = arith.constant 0 : i32
    return %c0_i32, %c0_i32_0 : i32, i32
  }
  func.func @transform_6(%arg0: i32) -> (i32, i32) {
    %c0_i32 = arith.constant 0 : i32
    %c0_i32_0 = arith.constant 0 : i32
    %c0_i32_1 = arith.constant 0 : i32
    return %c0_i32, %c0_i32_0 : i32, i32
  }
  func.func @transform_7(%arg0: i32) -> (i32, i32) {
    %c0_i32 = arith.constant 0 : i32
    %c0_i32_0 = arith.constant 0 : i32
    %c0_i32_1 = arith.constant 0 : i32
    return %c0_i32, %c0_i32_0 : i32, i32
  }
  func.func @transform_8(%arg0: i32) -> (i32, i32) {
    %c0_i32 = arith.constant 0 : i32
    %c0_i32_0 = arith.constant 0 : i32
    %c0_i32_1 = arith.constant 0 : i32
    return %c0_i32, %c0_i32_0 : i32, i32
  }
  func.func @transform_9(%arg0: i32) -> (i32, i32) {
    %c0_i32 = arith.constant 0 : i32
    %c0_i32_0 = arith.constant 0 : i32
    %c0_i32_1 = arith.constant 0 : i32
    return %c0_i32, %c0_i32_0 : i32, i32
  }
  func.func @transform_10(%arg0: i32) -> (i32, i32) {
    %c0_i32 = arith.constant 0 : i32
    %c0_i32_0 = arith.constant 0 : i32
    %c0_i32_1 = arith.constant 0 : i32
    return %c0_i32, %c0_i32_0 : i32, i32
  }
  func.func @transform_11(%arg0: i32) -> (i32, i32) {
    %c0_i32 = arith.constant 0 : i32
    %c0_i32_0 = arith.constant 0 : i32
    %c0_i32_1 = arith.constant 0 : i32
    return %c0_i32, %c0_i32_0 : i32, i32
  }
  func.func @transform_12(%arg0: i32) -> (i32, i32) {
    %c0_i32 = arith.constant 0 : i32
    %c0_i32_0 = arith.constant 0 : i32
    %c0_i32_1 = arith.constant 0 : i32
    return %c0_i32, %c0_i32_0 : i32, i32
  }
  func.func @transform_13(%arg0: i32) -> (i32, i32) {
    %c0_i32 = arith.constant 0 : i32
    %c0_i32_0 = arith.constant 0 : i32
    %c0_i32_1 = arith.constant 0 : i32
    return %c0_i32, %c0_i32_0 : i32, i32
  }
  func.func @transform_14(%arg0: i32) -> (i32, i32, i32) {
    %c0_i32 = arith.constant 0 : i32
    %c0_i32_0 = arith.constant 0 : i32
    %c0_i32_1 = arith.constant 0 : i32
    return %arg0, %c0_i32, %c0_i32_0 : i32, i32, i32
  }
}

</mosaic_0001>

<llo_original>
// kernel: tpu_custom_call.1
$region0: #{tpu_custom_call.1}
  #allocation0 [shape = 'u32[]', space=smem, size = 0x4, offset = 0x4, fixed_abs, tag = 'smem constant byte address 0x4 - core index']
  #allocation1 [shape = 'u32[72,128]{1,0:T(1,128)}', space=vmem, size = 0x9000, scoped, tag = 'internal scratch']
  #allocation2 [shape = 'f32[8,8,8]{2,1,0:T(8,128)}', space=vmem, size = 0x8000, scoped, tag = 'scratch operand']
  #allocation3 [shape = 'f32[8,8,8]{2,1,0:T(8,128)}', space=vmem, size = 0x8000, scoped, tag = 'scratch operand']
  #allocation4 [shape = 'f32[8,8,8]{2,1,0:T(8,128)}', space=vmem, size = 0x8000, scoped, tag = 'scratch operand']
  #allocation5 [shape = 'f32[16,32]{1,0:T(8,128)}', space=vmem, size = 0x2000, scoped, tag = 'scratch operand']
  %s0 = inlined_call_operand.vmem [shape: f32[4,8,32], index: 0, kind: input, shape index: {}]
  %s1 = inlined_call_operand.hbm [shape: f32[4,1,8], index: 1, kind: input, shape index: {}]
  %s2 = inlined_call_operand.vmem [shape: f32[32,96], index: 2, kind: input, shape index: {}]
  %s3 = inlined_call_operand.vmem [shape: f32[1,96], index: 3, kind: input, shape index: {}]
  %s4 = inlined_call_operand.vmem [shape: f32[32,32], index: 4, kind: input, shape index: {}]
  %s5 = inlined_call_operand.vmem [shape: f32[1,32], index: 5, kind: input, shape index: {}]
  %s6 = inlined_call_operand.vmem [shape: f32[1,32], index: 6, kind: input, shape index: {}]
  %s7 = inlined_call_operand.vmem [shape: f32[1,32], index: 7, kind: input, shape index: {}]
  %s8 = inlined_call_operand.hbm [shape: f32[32,64], index: 8, kind: input, shape index: {}]
  %s9 = inlined_call_operand.vmem [shape: f32[1,64], index: 9, kind: input, shape index: {}]
  %s10 = inlined_call_operand.vmem [shape: f32[64,32], index: 10, kind: input, shape index: {}]
  %s11 = inlined_call_operand.vmem [shape: f32[1,32], index: 11, kind: input, shape index: {}]
  %s12 = inlined_call_operand.vmem [shape: f32[1,32], index: 12, kind: input, shape index: {}]
  %s13 = inlined_call_operand.vmem [shape: f32[1,32], index: 13, kind: input, shape index: {}]
  %s14 = inlined_call_operand.hbm [shape: f32[4,8,32], index: 14, kind: output, shape index: {}]
  %s15 = sld [smem:[#allocation0]]
  $region97: #{tpu_custom_call.1} parent=0
    _
  %s17 = ssub.s32 1, %s15
  %s18 = scalar_select 0, %s17, %s15
  $region1: #{tpu_custom_call.1} parent=0
    #allocation6 [shape = 'u8[2048]{0}', space=vmem, size = 0x800, scoped, tag = 'input window, operand 1']
    #allocation7 [shape = 's32[2]{0}', space=sflag, size = 0x8, scoped, tag = 'scoped memory for tpu_custom_call.1']
    #allocation8 [shape = 's32[2]{0}', space=sflag, size = 0x8, scoped, tag = 'scoped memory for tpu_custom_call.1']
    #allocation9 [shape = 'u8[16384]{0}', space=vmem, size = 0x4000, scoped, tag = 'input window, operand 8, single buffered']
    #allocation10 [shape = 's32[1]{0}', space=sflag, size = 0x4, scoped, tag = 'scoped memory for tpu_custom_call.1']
    #allocation11 [shape = 'u8[16384]{0}', space=vmem, size = 0x4000, scoped, tag = 'output window, operand 0']
    %19 = vsyncpa [#allocation7], 0
    %s20 = scalar_lea.sflag [#allocation7], 1
    %21 = vsyncpa %s20, 0
    %22 = vsyncpa [#allocation10], 0
    %23 = vsyncpa [#allocation8], 0
    %s24 = scalar_lea.sflag [#allocation8], 1
    %25 = vsyncpa %s24, 0
    loop: start=0, step=1, limit=4
    $region2: #{tpu_custom_call.1} parent=1 // loop_pre_header
      _
    $region3: #{tpu_custom_call.1} parent=1 // loop_header
      %s27 = sphi 0, %s31
      %p28 = scmp.ge.s32.totalorder %s27, 4
      %s37 = sphi 0, %s39
      %s40 = sphi 0, %s37
      %s41 = sphi 0, %s40
      %s57 = sphi 0, %s41
      %s63 = sphi 0, %s65
      %s66 = sphi 0, %s63
      %s67 = sphi 0, %s66
      %s83 = sphi 0, %s67
      %s87 = sphi 0, %s87
      %s89 = sphi 0, %s87
      %s90 = sphi 0, %s89
      %s104 = sphi 0, %s90
      %s108 = sphi 0, %s108
      %s110 = sphi 0, %s108
      %s111 = sphi 0, %s110
      %s125 = sphi 0, %s111
      %s129 = sphi 0, %s129
      %s131 = sphi 0, %s129
      %s132 = sphi 0, %s131
      %s146 = sphi 0, %s132
      %s150 = sphi 0, %s150
      %s152 = sphi 0, %s150
      %s153 = sphi 0, %s152
      %s167 = sphi 0, %s153
      %s171 = sphi 0, %s171
      %s173 = sphi 0, %s171
      %s174 = sphi 0, %s173
      %s188 = sphi 0, %s174
      %s192 = sphi 0, %s192
      %s194 = sphi 0, %s192
      %s195 = sphi 0, %s194
      %s209 = sphi 0, %s195
      %s213 = sphi 0, %s213
      %s215 = sphi 0, %s213
      %s216 = sphi 0, %s215
      %s230 = sphi 0, %s216
      %s234 = sphi 0, %s234
      %s236 = sphi 0, %s234
      %s237 = sphi 0, %s236
      %s251 = sphi 0, %s237
      %s255 = sphi 0, %s255
      %s257 = sphi 0, %s255
      %s258 = sphi 0, %s257
      %s272 = sphi 0, %s258
      %s276 = sphi 0, %s276
      %s278 = sphi 0, %s276
      %s279 = sphi 0, %s278
      %s293 = sphi 0, %s279
      %s297 = sphi 0, %s297
      %s299 = sphi 0, %s297
      %s300 = sphi 0, %s299
      %s314 = sphi 0, %s300
      %s318 = sphi 0, %s318
      %s320 = sphi 0, %s318
      %s321 = sphi 0, %s320
      %s335 = sphi 0, %s321
      %s341 = sphi 0, %s343
      %s344 = sphi 0, %s341
      %s345 = sphi 0, %s344
      %s361 = sphi 0, %s345
    $region4: #{tpu_custom_call.1} parent=1 // loop_header_branch
      %30 = sbr.rel (%p28) target = $region8
    $region5: #{tpu_custom_call.1} parent=1 // loop_body
      %s32 = ssub.s32 %s27, 1
      %s33 = ssub.s32 %s27, 2
      %s34 = sadd.s32 %s27, 1
      %s35 = ssub.s32 %s27, %s34
      %p36 = scmp.eq.s32.totalorder %s35, 0
      %s38 = sadd.s32 %s37, 1
      %s39 = scalar_select %p36, %s37, %s38
      %p42 = pneg %p36
      %p43 = scmp.eq.s32.totalorder %s27, 1
      %p44 = por %p42, %p43
      %p45 = scmp.ne.s32.totalorder %s37, %s40
      %p46 = scmp.eq.s32.totalorder %s27, 0
      %p47 = por %p45, %p46
      %p48 = scmp.ne.s32.totalorder %s37, %s40
      %p49 = scmp.eq.s32.totalorder %s32, 1
      %p50 = por %p48, %p49
      %p51 = scmp.ne.s32.totalorder %s40, %s41
      %p52 = scmp.eq.s32.totalorder %s32, 0
      %p53 = por %p51, %p52
      %p54 = scmp.ne.s32.totalorder %s40, %s41
      %p55 = scmp.eq.s32.totalorder %s33, 1
      %p56 = por %p54, %p55
      %p58 = scmp.ne.s32.totalorder %s41, %s57
      %p59 = scmp.eq.s32.totalorder %s33, 0
      %p60 = por %p58, %p59
      %s61 = ssub.s32 %s27, %s34
      %p62 = scmp.eq.s32.totalorder %s61, 0
      %s64 = sadd.s32 %s63, 1
      %s65 = scalar_select %p62, %s63, %s64
      %p68 = pneg %p62
      %p69 = scmp.eq.s32.totalorder %s27, 1
      %p70 = por %p68, %p69
      %p71 = scmp.ne.s32.totalorder %s63, %s66
      %p72 = scmp.eq.s32.totalorder %s27, 0
      %p73 = por %p71, %p72
      %p74 = scmp.ne.s32.totalorder %s63, %s66
      %p75 = scmp.eq.s32.totalorder %s32, 1
      %p76 = por %p74, %p75
      %p77 = scmp.ne.s32.totalorder %s66, %s67
      %p78 = scmp.eq.s32.totalorder %s32, 0
      %p79 = por %p77, %p78
      %p80 = scmp.ne.s32.totalorder %s66, %s67
      %p81 = scmp.eq.s32.totalorder %s33, 1
      %p82 = por %p80, %p81
      %p84 = scmp.ne.s32.totalorder %s67, %s83
      %p85 = scmp.eq.s32.totalorder %s33, 0
      %p86 = por %p84, %p85
      %s88 = sadd.s32 %s87, 1
      %p91 = scmp.eq.s32.totalorder %s27, 1
      %p92 = scmp.ne.s32.totalorder %s87, %s89
      %p93 = scmp.eq.s32.totalorder %s27, 0
      %p94 = por %p92, %p93
      %p95 = scmp.ne.s32.totalorder %s87, %s89
      %p96 = scmp.eq.s32.totalorder %s32, 1
      %p97 = por %p95, %p96
      %p98 = scmp.ne.s32.totalorder %s89, %s90
      %p99 = scmp.eq.s32.totalorder %s32, 0
      %p100 = por %p98, %p99
      %p101 = scmp.ne.s32.totalorder %s89, %s90
      %p102 = scmp.eq.s32.totalorder %s33, 1
      %p103 = por %p101, %p102
      %p105 = scmp.ne.s32.totalorder %s90, %s104
      %p106 = scmp.eq.s32.totalorder %s33, 0
      %p107 = por %p105, %p106
      %s109 = sadd.s32 %s108, 1
      %p112 = scmp.eq.s32.totalorder %s27, 1
      %p113 = scmp.ne.s32.totalorder %s108, %s110
      %p114 = scmp.eq.s32.totalorder %s27, 0
      %p115 = por %p113, %p114
      %p116 = scmp.ne.s32.totalorder %s108, %s110
      %p117 = scmp.eq.s32.totalorder %s32, 1
      %p118 = por %p116, %p117
      %p119 = scmp.ne.s32.totalorder %s110, %s111
      %p120 = scmp.eq.s32.totalorder %s32, 0
      %p121 = por %p119, %p120
      %p122 = scmp.ne.s32.totalorder %s110, %s111
      %p123 = scmp.eq.s32.totalorder %s33, 1
      %p124 = por %p122, %p123
      %p126 = scmp.ne.s32.totalorder %s111, %s125
      %p127 = scmp.eq.s32.totalorder %s33, 0
      %p128 = por %p126, %p127
      %s130 = sadd.s32 %s129, 1
      %p133 = scmp.eq.s32.totalorder %s27, 1
      %p134 = scmp.ne.s32.totalorder %s129, %s131
      %p135 = scmp.eq.s32.totalorder %s27, 0
      %p136 = por %p134, %p135
      %p137 = scmp.ne.s32.totalorder %s129, %s131
      %p138 = scmp.eq.s32.totalorder %s32, 1
      %p139 = por %p137, %p138
      %p140 = scmp.ne.s32.totalorder %s131, %s132
      %p141 = scmp.eq.s32.totalorder %s32, 0
      %p142 = por %p140, %p141
      %p143 = scmp.ne.s32.totalorder %s131, %s132
      %p144 = scmp.eq.s32.totalorder %s33, 1
      %p145 = por %p143, %p144
      %p147 = scmp.ne.s32.totalorder %s132, %s146
      %p148 = scmp.eq.s32.totalorder %s33, 0
      %p149 = por %p147, %p148
      %s151 = sadd.s32 %s150, 1
      %p154 = scmp.eq.s32.totalorder %s27, 1
      %p155 = scmp.ne.s32.totalorder %s150, %s152
      %p156 = scmp.eq.s32.totalorder %s27, 0
      %p157 = por %p155, %p156
      %p158 = scmp.ne.s32.totalorder %s150, %s152
      %p159 = scmp.eq.s32.totalorder %s32, 1
      %p160 = por %p158, %p159
      %p161 = scmp.ne.s32.totalorder %s152, %s153
      %p162 = scmp.eq.s32.totalorder %s32, 0
      %p163 = por %p161, %p162
      %p164 = scmp.ne.s32.totalorder %s152, %s153
      %p165 = scmp.eq.s32.totalorder %s33, 1
      %p166 = por %p164, %p165
      %p168 = scmp.ne.s32.totalorder %s153, %s167
      %p169 = scmp.eq.s32.totalorder %s33, 0
      %p170 = por %p168, %p169
      %s172 = sadd.s32 %s171, 1
      %p175 = scmp.eq.s32.totalorder %s27, 1
      %p176 = scmp.ne.s32.totalorder %s171, %s173
      %p177 = scmp.eq.s32.totalorder %s27, 0
      %p178 = por %p176, %p177
      %p179 = scmp.ne.s32.totalorder %s171, %s173
      %p180 = scmp.eq.s32.totalorder %s32, 1
      %p181 = por %p179, %p180
      %p182 = scmp.ne.s32.totalorder %s173, %s174
      %p183 = scmp.eq.s32.totalorder %s32, 0
      %p184 = por %p182, %p183
      %p185 = scmp.ne.s32.totalorder %s173, %s174
      %p186 = scmp.eq.s32.totalorder %s33, 1
      %p187 = por %p185, %p186
      %p189 = scmp.ne.s32.totalorder %s174, %s188
      %p190 = scmp.eq.s32.totalorder %s33, 0
      %p191 = por %p189, %p190
      %s193 = sadd.s32 %s192, 1
      %p196 = scmp.eq.s32.totalorder %s27, 1
      %p197 = scmp.ne.s32.totalorder %s192, %s194
      %p198 = scmp.eq.s32.totalorder %s27, 0
      %p199 = por %p197, %p198
      %p200 = scmp.ne.s32.totalorder %s192, %s194
      %p201 = scmp.eq.s32.totalorder %s32, 1
      %p202 = por %p200, %p201
      %p203 = scmp.ne.s32.totalorder %s194, %s195
      %p204 = scmp.eq.s32.totalorder %s32, 0
      %p205 = por %p203, %p204
      %p206 = scmp.ne.s32.totalorder %s194, %s195
      %p207 = scmp.eq.s32.totalorder %s33, 1
      %p208 = por %p206, %p207
      %p210 = scmp.ne.s32.totalorder %s195, %s209
      %p211 = scmp.eq.s32.totalorder %s33, 0
      %p212 = por %p210, %p211
      %s214 = sadd.s32 %s213, 1
      %p217 = scmp.eq.s32.totalorder %s27, 1
      %p218 = scmp.ne.s32.totalorder %s213, %s215
      %p219 = scmp.eq.s32.totalorder %s27, 0
      %p220 = por %p218, %p219
      %p221 = scmp.ne.s32.totalorder %s213, %s215
      %p222 = scmp.eq.s32.totalorder %s32, 1
      %p223 = por %p221, %p222
      %p224 = scmp.ne.s32.totalorder %s215, %s216
      %p225 = scmp.eq.s32.totalorder %s32, 0
      %p226 = por %p224, %p225
      %p227 = scmp.ne.s32.totalorder %s215, %s216
      %p228 = scmp.eq.s32.totalorder %s33, 1
      %p229 = por %p227, %p228
      %p231 = scmp.ne.s32.totalorder %s216, %s230
      %p232 = scmp.eq.s32.totalorder %s33, 0
      %p233 = por %p231, %p232
      %s235 = sadd.s32 %s234, 1
      %p238 = scmp.eq.s32.totalorder %s27, 1
      %p239 = scmp.ne.s32.totalorder %s234, %s236
      %p240 = scmp.eq.s32.totalorder %s27, 0
      %p241 = por %p239, %p240
      %p242 = scmp.ne.s32.totalorder %s234, %s236
      %p243 = scmp.eq.s32.totalorder %s32, 1
      %p244 = por %p242, %p243
      %p245 = scmp.ne.s32.totalorder %s236, %s237
      %p246 = scmp.eq.s32.totalorder %s32, 0
      %p247 = por %p245, %p246
      %p248 = scmp.ne.s32.totalorder %s236, %s237
      %p249 = scmp.eq.s32.totalorder %s33, 1
      %p250 = por %p248, %p249
      %p252 = scmp.ne.s32.totalorder %s237, %s251
      %p253 = scmp.eq.s32.totalorder %s33, 0
      %p254 = por %p252, %p253
      %s256 = sadd.s32 %s255, 1
      %p259 = scmp.eq.s32.totalorder %s27, 1
      %p260 = scmp.ne.s32.totalorder %s255, %s257
      %p261 = scmp.eq.s32.totalorder %s27, 0
      %p262 = por %p260, %p261
      %p263 = scmp.ne.s32.totalorder %s255, %s257
      %p264 = scmp.eq.s32.totalorder %s32, 1
      %p265 = por %p263, %p264
      %p266 = scmp.ne.s32.totalorder %s257, %s258
      %p267 = scmp.eq.s32.totalorder %s32, 0
      %p268 = por %p266, %p267
      %p269 = scmp.ne.s32.totalorder %s257, %s258
      %p270 = scmp.eq.s32.totalorder %s33, 1
      %p271 = por %p269, %p270
      %p273 = scmp.ne.s32.totalorder %s258, %s272
      %p274 = scmp.eq.s32.totalorder %s33, 0
      %p275 = por %p273, %p274
      %s277 = sadd.s32 %s276, 1
      %p280 = scmp.eq.s32.totalorder %s27, 1
      %p281 = scmp.ne.s32.totalorder %s276, %s278
      %p282 = scmp.eq.s32.totalorder %s27, 0
      %p283 = por %p281, %p282
      %p284 = scmp.ne.s32.totalorder %s276, %s278
      %p285 = scmp.eq.s32.totalorder %s32, 1
      %p286 = por %p284, %p285
      %p287 = scmp.ne.s32.totalorder %s278, %s279
      %p288 = scmp.eq.s32.totalorder %s32, 0
      %p289 = por %p287, %p288
      %p290 = scmp.ne.s32.totalorder %s278, %s279
      %p291 = scmp.eq.s32.totalorder %s33, 1
      %p292 = por %p290, %p291
      %p294 = scmp.ne.s32.totalorder %s279, %s293
      %p295 = scmp.eq.s32.totalorder %s33, 0
      %p296 = por %p294, %p295
      %s298 = sadd.s32 %s297, 1
      %p301 = scmp.eq.s32.totalorder %s27, 1
      %p302 = scmp.ne.s32.totalorder %s297, %s299
      %p303 = scmp.eq.s32.totalorder %s27, 0
      %p304 = por %p302, %p303
      %p305 = scmp.ne.s32.totalorder %s297, %s299
      %p306 = scmp.eq.s32.totalorder %s32, 1
      %p307 = por %p305, %p306
      %p308 = scmp.ne.s32.totalorder %s299, %s300
      %p309 = scmp.eq.s32.totalorder %s32, 0
      %p310 = por %p308, %p309
      %p311 = scmp.ne.s32.totalorder %s299, %s300
      %p312 = scmp.eq.s32.totalorder %s33, 1
      %p313 = por %p311, %p312
      %p315 = scmp.ne.s32.totalorder %s300, %s314
      %p316 = scmp.eq.s32.totalorder %s33, 0
      %p317 = por %p315, %p316
      %s319 = sadd.s32 %s318, 1
      %p322 = scmp.eq.s32.totalorder %s27, 1
      %p323 = scmp.ne.s32.totalorder %s318, %s320
      %p324 = scmp.eq.s32.totalorder %s27, 0
      %p325 = por %p323, %p324
      %p326 = scmp.ne.s32.totalorder %s318, %s320
      %p327 = scmp.eq.s32.totalorder %s32, 1
      %p328 = por %p326, %p327
      %p329 = scmp.ne.s32.totalorder %s320, %s321
      %p330 = scmp.eq.s32.totalorder %s32, 0
      %p331 = por %p329, %p330
      %p332 = scmp.ne.s32.totalorder %s320, %s321
      %p333 = scmp.eq.s32.totalorder %s33, 1
      %p334 = por %p332, %p333
      %p336 = scmp.ne.s32.totalorder %s321, %s335
      %p337 = scmp.eq.s32.totalorder %s33, 0
      %p338 = por %p336, %p337
      %s339 = ssub.s32 %s27, %s34
      %p340 = scmp.eq.s32.totalorder %s339, 0
      %s342 = sadd.s32 %s341, 1
      %s343 = scalar_select %p340, %s341, %s342
      %p346 = pneg %p340
      %p347 = scmp.eq.s32.totalorder %s27, 1
      %p348 = por %p346, %p347
      %p349 = scmp.ne.s32.totalorder %s341, %s344
      %p350 = scmp.eq.s32.totalorder %s27, 0
      %p351 = por %p349, %p350
      %p352 = scmp.ne.s32.totalorder %s341, %s344
      %p353 = scmp.eq.s32.totalorder %s32, 1
      %p354 = por %p352, %p353
      %p355 = scmp.ne.s32.totalorder %s344, %s345
      %p356 = scmp.eq.s32.totalorder %s32, 0
      %p357 = por %p355, %p356
      %p358 = scmp.ne.s32.totalorder %s344, %s345
      %p359 = scmp.eq.s32.totalorder %s33, 1
      %p360 = por %p358, %p359
      %p362 = scmp.ne.s32.totalorder %s345, %s361
      %p363 = scmp.eq.s32.totalorder %s33, 0
      %p364 = por %p362, %p363
      %p365 = scmp.le.s32.totalorder 1, %s27
      %p366 = scmp.lt.s32.totalorder %s27, 3
      %p367 = pnand %p365, %p366
      %p368 = pneg %p367
      // Predicated region
      $region9: #{tpu_custom_call.1} parent=5 // pred_check
        _
      $region10: #{tpu_custom_call.1} parent=5 // pred_check_branch
        %370 = sbr.rel (%p367) target = $region12
      $region11: #{tpu_custom_call.1} parent=5 // pred_region
        %s371 = ssub.s32 %s27, 1
        // Predicated region
        $region13: #{tpu_custom_call.1} parent=11 // pred_check
          %p372 = pneg %p100
        $region14: #{tpu_custom_call.1} parent=11 // pred_check_branch
          %374 = sbr.rel (%p372) target = $region16
        $region15: #{tpu_custom_call.1} parent=11 // pred_region
          _
        $region16: #{tpu_custom_call.1} parent=11 // pred_fallthru
          _
        // Predicated region
        $region17: #{tpu_custom_call.1} parent=11 // pred_check
          %p375 = pneg %p121
        $region18: #{tpu_custom_call.1} parent=11 // pred_check_branch
          %377 = sbr.rel (%p375) target = $region20
        $region19: #{tpu_custom_call.1} parent=11 // pred_region
          _
        $region20: #{tpu_custom_call.1} parent=11 // pred_fallthru
          _
        // Predicated region
        $region21: #{tpu_custom_call.1} parent=11 // pred_check
          %p378 = pneg %p142
        $region22: #{tpu_custom_call.1} parent=11 // pred_check_branch
          %380 = sbr.rel (%p378) target = $region24
        $region23: #{tpu_custom_call.1} parent=11 // pred_region
          _
        $region24: #{tpu_custom_call.1} parent=11 // pred_fallthru
          _
        // Predicated region
        $region25: #{tpu_custom_call.1} parent=11 // pred_check
          %p381 = pneg %p163
        $region26: #{tpu_custom_call.1} parent=11 // pred_check_branch
          %383 = sbr.rel (%p381) target = $region28
        $region27: #{tpu_custom_call.1} parent=11 // pred_region
          _
        $region28: #{tpu_custom_call.1} parent=11 // pred_fallthru
          _
        // Predicated region
        $region29: #{tpu_custom_call.1} parent=11 // pred_check
          %p384 = pneg %p184
        $region30: #{tpu_custom_call.1} parent=11 // pred_check_branch
          %386 = sbr.rel (%p384) target = $region32
        $region31: #{tpu_custom_call.1} parent=11 // pred_region
          _
        $region32: #{tpu_custom_call.1} parent=11 // pred_fallthru
          _
        // Predicated region
        $region33: #{tpu_custom_call.1} parent=11 // pred_check
          %p387 = pneg %p205
        $region34: #{tpu_custom_call.1} parent=11 // pred_check_branch
          %389 = sbr.rel (%p387) target = $region36
        $region35: #{tpu_custom_call.1} parent=11 // pred_region
          _
        $region36: #{tpu_custom_call.1} parent=11 // pred_fallthru
          _
        // Predicated region
        $region37: #{tpu_custom_call.1} parent=11 // pred_check
          %p390 = pneg %p226
        $region38: #{tpu_custom_call.1} parent=11 // pred_check_branch
          %392 = sbr.rel (%p390) target = $region40
        $region39: #{tpu_custom_call.1} parent=11 // pred_region
          %394 = vsyncadd [#allocation10], 0
          %s395 = sshll.u32 %s8, 4
          %s396 = int_to_ptr.hbm [resolvable:$true] %s395
          %s397 = sshll.u32 [#allocation9], 4
          %s398 = int_to_ptr.vmem [resolvable:$true] %s397
          %403 = dma.hbm_to_vmem [thread:$0]  %s396, 512, %s398, [#allocation10], 128, 128, 8
        $region40: #{tpu_custom_call.1} parent=11 // pred_fallthru
          _
        // Predicated region
        $region41: #{tpu_custom_call.1} parent=11 // pred_check
          %p404 = pneg %p247
        $region42: #{tpu_custom_call.1} parent=11 // pred_check_branch
          %406 = sbr.rel (%p404) target = $region44
        $region43: #{tpu_custom_call.1} parent=11 // pred_region
          _
        $region44: #{tpu_custom_call.1} parent=11 // pred_fallthru
          _
        // Predicated region
        $region45: #{tpu_custom_call.1} parent=11 // pred_check
          %p407 = pneg %p268
        $region46: #{tpu_custom_call.1} parent=11 // pred_check_branch
          %409 = sbr.rel (%p407) target = $region48
        $region47: #{tpu_custom_call.1} parent=11 // pred_region
          _
        $region48: #{tpu_custom_call.1} parent=11 // pred_fallthru
          _
        // Predicated region
        $region49: #{tpu_custom_call.1} parent=11 // pred_check
          %p410 = pneg %p289
        $region50: #{tpu_custom_call.1} parent=11 // pred_check_branch
          %412 = sbr.rel (%p410) target = $region52
        $region51: #{tpu_custom_call.1} parent=11 // pred_region
          _
        $region52: #{tpu_custom_call.1} parent=11 // pred_fallthru
          _
        // Predicated region
        $region53: #{tpu_custom_call.1} parent=11 // pred_check
          %p413 = pneg %p310
        $region54: #{tpu_custom_call.1} parent=11 // pred_check_branch
          %415 = sbr.rel (%p413) target = $region56
        $region55: #{tpu_custom_call.1} parent=11 // pred_region
          _
        $region56: #{tpu_custom_call.1} parent=11 // pred_fallthru
          _
        // Predicated region
        $region57: #{tpu_custom_call.1} parent=11 // pred_check
          %p416 = pneg %p331
        $region58: #{tpu_custom_call.1} parent=11 // pred_check_branch
          %418 = sbr.rel (%p416) target = $region60
        $region59: #{tpu_custom_call.1} parent=11 // pred_region
          _
        $region60: #{tpu_custom_call.1} parent=11 // pred_fallthru
          _
      $region12: #{tpu_custom_call.1} parent=5 // pred_fallthru
        _
      %p419 = scmp.lt.s32.totalorder %s27, 2
      // Predicated region
      $region61: #{tpu_custom_call.1} parent=5 // pred_check
        %p420 = pneg %p419
      $region62: #{tpu_custom_call.1} parent=5 // pred_check_branch
        %422 = sbr.rel (%p420) target = $region64
      $region63: #{tpu_custom_call.1} parent=5 // pred_region
        // Predicated region
        $region65: #{tpu_custom_call.1} parent=63 // pred_check
          %p423 = pneg %p47
        $region66: #{tpu_custom_call.1} parent=63 // pred_check_branch
          %425 = sbr.rel (%p423) target = $region68
        $region67: #{tpu_custom_call.1} parent=63 // pred_region
          %s426 = smul.u32 2, %s27
          %p427 = scmp.lt.s32.totalorder %s426, 3
          %s428 = scalar_select %p427, %s426, 3
          %s429 = smul.addr %s428, 8
          %s430 = scalar_lea.vmem %s0, %s429
          %s431 = smul.u32 2, %s27
        $region68: #{tpu_custom_call.1} parent=63 // pred_fallthru
          _
        // Predicated region
        $region69: #{tpu_custom_call.1} parent=63 // pred_check
          %p432 = pneg %p73
        $region70: #{tpu_custom_call.1} parent=63 // pred_check_branch
          %434 = sbr.rel (%p432) target = $region72
        $region71: #{tpu_custom_call.1} parent=63 // pred_region
          %s435 = sand.u32 %s63, 1
          %s436 = scalar_lea.sflag [#allocation7], %s435
          %s437 = sand.u32 %s63, 1
          %s438 = smul.addr %s437, 2
          %s439 = scalar_lea.vmem [#allocation6], %s438
          %s440 = smul.u32 2, %s27
          %442 = vsyncadd %s436, 0
          %s443 = scalar_lea.hbm %s1, %s440
          %s444 = sshll.u32 %s443, 4
          %s445 = int_to_ptr.hbm [resolvable:$true] %s444
          %s446 = sshll.u32 %s439, 4
          %s447 = int_to_ptr.vmem [resolvable:$true] %s446
          %452 = dma.hbm_to_vmem [thread:$0]  %s445, 32, %s447, %s436, 16, 16, 1
        $region72: #{tpu_custom_call.1} parent=63 // pred_fallthru
          _
      $region64: #{tpu_custom_call.1} parent=5 // pred_fallthru
        _
      %p453 = scmp.le.s32.totalorder 1, %s27
      %p454 = scmp.lt.s32.totalorder %s27, 3
      %p455 = pnand %p453, %p454
      %p456 = pneg %p455
      // Predicated region
      $region73: #{tpu_custom_call.1} parent=5 // pred_check
        _
      $region74: #{tpu_custom_call.1} parent=5 // pred_check_branch
        %458 = sbr.rel (%p455) target = $region76
      $region75: #{tpu_custom_call.1} parent=5 // pred_region
        %s459 = ssub.s32 %s27, 1
        %s460 = sand.u32 %s66, 1
        %s461 = scalar_lea.sflag [#allocation7], %s460
        %s462 = sand.u32 %s66, 1
        %s463 = smul.addr %s462, 2
        %s464 = scalar_lea.vmem [#allocation6], %s463
        // Predicated region
        $region77: #{tpu_custom_call.1} parent=75 // pred_check
          %p465 = pneg %p79
        $region78: #{tpu_custom_call.1} parent=75 // pred_check_branch
          %467 = sbr.rel (%p465) target = $region80
        $region79: #{tpu_custom_call.1} parent=75 // pred_region
          %469 = dma.done %s461, 32
        $region80: #{tpu_custom_call.1} parent=75 // pred_fallthru
          _
        // Predicated region
        $region81: #{tpu_custom_call.1} parent=75 // pred_check
          %p470 = pneg %p226
        $region82: #{tpu_custom_call.1} parent=75 // pred_check_branch
          %472 = sbr.rel (%p470) target = $region84
        $region83: #{tpu_custom_call.1} parent=75 // pred_region
          %474 = dma.done [#allocation10], 512
        $region84: #{tpu_custom_call.1} parent=75 // pred_fallthru
          _
        %s475 = smul.u32 2, %s32
        %p476 = scmp.lt.s32.totalorder %s475, 3
        %s477 = scalar_select %p476, %s475, 3
        %s478 = smul.addr %s477, 8
        %s479 = scalar_lea.vmem %s0, %s478
        %p480 = pneg %p53
        %p481 = pneg %p50
        %s482 = sand.u32 %s66, 1
        %s483 = scalar_lea.sflag [#allocation7], %s482
        %s484 = sand.u32 %s66, 1
        %s485 = smul.addr %s484, 2
        %s486 = scalar_lea.vmem [#allocation6], %s485
        %p487 = pneg %p79
        %p488 = pneg %p76
        %p489 = pneg %p100
        %p490 = pneg %p97
        %p491 = pneg %p121
        %p492 = pneg %p118
        %p493 = pneg %p142
        %p494 = pneg %p139
        %p495 = pneg %p163
        %p496 = pneg %p160
        %p497 = pneg %p184
        %p498 = pneg %p181
        %p499 = pneg %p205
        %p500 = pneg %p202
        %p501 = pneg %p226
        %p502 = pneg %p223
        %p503 = pneg %p247
        %p504 = pneg %p244
        %p505 = pneg %p268
        %p506 = pneg %p265
        %p507 = pneg %p289
        %p508 = pneg %p286
        %p509 = pneg %p310
        %p510 = pneg %p307
        %p511 = pneg %p331
        %p512 = pneg %p328
        %p513 = pneg %p357
        %p514 = pneg %p354
        %s515 = sand.u32 %s344, 1
        %s516 = scalar_lea.sflag [#allocation8], %s515
        %s517 = sand.u32 %s344, 1
        %s518 = smul.addr %s517, 16
        %s519 = scalar_lea.vmem [#allocation11], %s518
        %s520 = smul.u32 2, %s32
        %p521 = scmp.lt.s32.totalorder %s520, 3
        %s522 = scalar_select %p521, %s520, 3
        %s523 = smul.addr %s522, 8
        %s524 = scalar_lea.vmem %s0, %s523
        %s525 = smul.u32 2, %s32
        %s526 = smul.u32 2, %s32
        %s527 = smul.u32 2, %s32
        %v528 = vld [vmem:[%s524] sm:$0xff]
        %v529 = vld [vmem:[%s524 + $0x8] sm:$0xff]
        %v530 = vld [vmem:[%s2] sm:$0xff]
        %v531 = vld [vmem:[%s2 + $0x8] sm:$0xff]
        %v532 = vld [vmem:[%s2 + $0x10] sm:$0xff]
        %v533 = vld [vmem:[%s2 + $0x18] sm:$0xff]
        %v534 = vld [vmem:[%s3] sm:$0x1]
        %v536 = vperm.slane %v534, 0
        %vm538 = vcmask 261120
        %v540 = vsel %vm538, %v528, 0
        %v543 = vsel %vm538, %v529, 0
        %545 = vmatpush.msra.mxu0 0.0
        %546 = vmatpush.msra.mxu0 0.0
        %547 = vmatpush.msra.mxu0 0.0
        %548 = vmatpush.msra.mxu0 0.0
        %549 = vmatpush.msra.mxu0 0.0
        %550 = vmatpush.msra.mxu0 0.0
        %551 = vmatpush.msra.mxu0 0.0
        %552 = vmatpush.msra.mxu0 0.0
        %553 = vmatpush.msra.mxu0 0.0
        %554 = vmatpush.msra.mxu0 0.0
        %555 = vmatpush.msra.mxu0 0.0
        %556 = vmatpush.msra.mxu0 0.0
        %557 = vmatpush.msra.mxu0 %v533
        %558 = vmatpush.msra.mxu0 %v532
        %559 = vmatpush.msra.mxu0 %v531
        %560 = vmatpush.msra.mxu0 %v530
        %561 = vmatmul.f32.gmra.mxu0 %v540
        %v562 = vpop.f32.mrf.mxu0
        %v563 = vadd.f32 %v536, %v562
        %564 = vmatmul.f32.gmra.mxu0 %v543
        %v565 = vpop.f32.mrf.mxu0
        %v566 = vadd.f32 %v536, %v565
        %567 = vdwg.mxu0
        %vm568 = vcmask 64512
        %569 = vst.msk [vmem:[#allocation2] sm:$0xff] %vm568, %v563
        %571 = vrot.lane.b32.xlu0 %v563, 96
        %v572 = vpop.permute.xlu0 %571
        %574 = vst.msk [vmem:[#allocation3] sm:$0xff] %vm568, %v572
        %575 = vrot.lane.b32.xlu0 %v563, 64
        %v576 = vpop.permute.xlu0 %575
        %578 = vst.msk [vmem:[#allocation4] sm:$0xff] %vm568, %v576
        %s579 = scalar_lea.vmem [#allocation2], 8
        %580 = vst.msk [vmem:[%s579] sm:$0xff] %vm568, %v566
        %582 = vrot.lane.b32.xlu0 %v566, 96
        %v583 = vpop.permute.xlu0 %582
        %s585 = scalar_lea.vmem [#allocation3], 8
        %586 = vst.msk [vmem:[%s585] sm:$0xff] %vm568, %v583
        %587 = vrot.lane.b32.xlu0 %v566, 64
        %v588 = vpop.permute.xlu0 %587
        %s590 = scalar_lea.vmem [#allocation4], 8
        %591 = vst.msk [vmem:[%s590] sm:$0xff] %vm568, %v588
        %592 = vrot.lane.b32.xlu0 %v563, 120
        %v593 = vpop.permute.xlu0 %592
        %s595 = scalar_lea.vmem [#allocation2], 16
        %596 = vst.msk [vmem:[%s595] sm:$0xff] %vm568, %v593
        %597 = vrot.lane.b32.xlu0 %v563, 88
        %v598 = vpop.permute.xlu0 %597
        %s600 = scalar_lea.vmem [#allocation3], 16
        %601 = vst.msk [vmem:[%s600] sm:$0xff] %vm568, %v598
        %602 = vrot.lane.b32.xlu0 %v563, 56
        %v603 = vpop.permute.xlu0 %602
        %s605 = scalar_lea.vmem [#allocation4], 16
        %606 = vst.msk [vmem:[%s605] sm:$0xff] %vm568, %v603
        %607 = vrot.lane.b32.xlu0 %v566, 120
        %v608 = vpop.permute.xlu0 %607
        %s610 = scalar_lea.vmem [#allocation2], 24
        %611 = vst.msk [vmem:[%s610] sm:$0xff] %vm568, %v608
        %612 = vrot.lane.b32.xlu0 %v566, 88
        %v613 = vpop.permute.xlu0 %612
        %s615 = scalar_lea.vmem [#allocation3], 24
        %616 = vst.msk [vmem:[%s615] sm:$0xff] %vm568, %v613
        %617 = vrot.lane.b32.xlu0 %v566, 56
        %v618 = vpop.permute.xlu0 %617
        %s620 = scalar_lea.vmem [#allocation4], 24
        %621 = vst.msk [vmem:[%s620] sm:$0xff] %vm568, %v618
        %622 = vrot.lane.b32.xlu0 %v563, 112
        %v623 = vpop.permute.xlu0 %622
        %s625 = scalar_lea.vmem [#allocation2], 32
        %626 = vst.msk [vmem:[%s625] sm:$0xff] %vm568, %v623
        %627 = vrot.lane.b32.xlu0 %v563, 80
        %v628 = vpop.permute.xlu0 %627
        %s630 = scalar_lea.vmem [#allocation3], 32
        %631 = vst.msk [vmem:[%s630] sm:$0xff] %vm568, %v628
        %632 = vrot.lane.b32.xlu0 %v563, 48
        %v633 = vpop.permute.xlu0 %632
        %s635 = scalar_lea.vmem [#allocation4], 32
        %636 = vst.msk [vmem:[%s635] sm:$0xff] %vm568, %v633
        %637 = vrot.lane.b32.xlu0 %v566, 112
        %v638 = vpop.permute.xlu0 %637
        %s640 = scalar_lea.vmem [#allocation2], 40
        %641 = vst.msk [vmem:[%s640] sm:$0xff] %vm568, %v638
        %642 = vrot.lane.b32.xlu0 %v566, 80
        %v643 = vpop.permute.xlu0 %642
        %s645 = scalar_lea.vmem [#allocation3], 40
        %646 = vst.msk [vmem:[%s645] sm:$0xff] %vm568, %v643
        %647 = vrot.lane.b32.xlu0 %v566, 48
        %v648 = vpop.permute.xlu0 %647
        %s650 = scalar_lea.vmem [#allocation4], 40
        %651 = vst.msk [vmem:[%s650] sm:$0xff] %vm568, %v648
        %652 = vrot.lane.b32.xlu0 %v563, 104
        %v653 = vpop.permute.xlu0 %652
        %s655 = scalar_lea.vmem [#allocation2], 48
        %656 = vst.msk [vmem:[%s655] sm:$0xff] %vm568, %v653
        %657 = vrot.lane.b32.xlu0 %v563, 72
        %v658 = vpop.permute.xlu0 %657
        %s660 = scalar_lea.vmem [#allocation3], 48
        %661 = vst.msk [vmem:[%s660] sm:$0xff] %vm568, %v658
        %662 = vrot.lane.b32.xlu0 %v563, 40
        %v663 = vpop.permute.xlu0 %662
        %s665 = scalar_lea.vmem [#allocation4], 48
        %666 = vst.msk [vmem:[%s665] sm:$0xff] %vm568, %v663
        %667 = vrot.lane.b32.xlu0 %v566, 104
        %v668 = vpop.permute.xlu0 %667
        %s670 = scalar_lea.vmem [#allocation2], 56
        %671 = vst.msk [vmem:[%s670] sm:$0xff] %vm568, %v668
        %672 = vrot.lane.b32.xlu0 %v566, 72
        %v673 = vpop.permute.xlu0 %672
        %s675 = scalar_lea.vmem [#allocation3], 56
        %676 = vst.msk [vmem:[%s675] sm:$0xff] %vm568, %v673
        %677 = vrot.lane.b32.xlu0 %v566, 40
        %v678 = vpop.permute.xlu0 %677
        %s680 = scalar_lea.vmem [#allocation4], 56
        %681 = vst.msk [vmem:[%s680] sm:$0xff] %vm568, %v678
        %v682 = vld [vmem:[#allocation2] sm:$0xff]
        %v683 = vld [vmem:[#allocation2 + $0x8] sm:$0xff]
        %v684 = vld [vmem:[#allocation2 + $0x10] sm:$0xff]
        %v685 = vld [vmem:[#allocation2 + $0x18] sm:$0xff]
        %v686 = vld [vmem:[#allocation2 + $0x20] sm:$0xff]
        %v687 = vld [vmem:[#allocation2 + $0x28] sm:$0xff]
        %v688 = vld [vmem:[#allocation2 + $0x30] sm:$0xff]
        %v689 = vld [vmem:[#allocation2 + $0x38] sm:$0xff]
        %v690 = vld [vmem:[#allocation3] sm:$0xff]
        %v691 = vld [vmem:[#allocation3 + $0x8] sm:$0xff]
        %v692 = vld [vmem:[#allocation3 + $0x10] sm:$0xff]
        %v693 = vld [vmem:[#allocation3 + $0x18] sm:$0xff]
        %v694 = vld [vmem:[#allocation3 + $0x20] sm:$0xff]
        %v695 = vld [vmem:[#allocation3 + $0x28] sm:$0xff]
        %v696 = vld [vmem:[#allocation3 + $0x30] sm:$0xff]
        %v697 = vld [vmem:[#allocation3 + $0x38] sm:$0xff]
        %v698 = vld [vmem:[#allocation4] sm:$0xff]
        %v699 = vld [vmem:[#allocation4 + $0x8] sm:$0xff]
        %v700 = vld [vmem:[#allocation4 + $0x10] sm:$0xff]
        %v701 = vld [vmem:[#allocation4 + $0x18] sm:$0xff]
        %v702 = vld [vmem:[#allocation4 + $0x20] sm:$0xff]
        %v703 = vld [vmem:[#allocation4 + $0x28] sm:$0xff]
        %v704 = vld [vmem:[#allocation4 + $0x30] sm:$0xff]
        %v705 = vld [vmem:[#allocation4 + $0x38] sm:$0xff]
        %v707 = vsel %vm568, %v682, 0
        %v710 = vsel %vm568, %v690, 0
        %712 = vmatpush.xpose.msra.mxu0 0.0
        %713 = vmatpush.xpose.msra.mxu0 0.0
        %714 = vmatpush.xpose.msra.mxu0 0.0
        %715 = vmatpush.xpose.msra.mxu0 0.0
        %716 = vmatpush.xpose.msra.mxu0 0.0
        %717 = vmatpush.xpose.msra.mxu0 0.0
        %718 = vmatpush.xpose.msra.mxu0 0.0
        %719 = vmatpush.xpose.msra.mxu0 0.0
        %720 = vmatpush.xpose.msra.mxu0 0.0
        %721 = vmatpush.xpose.msra.mxu0 0.0
        %722 = vmatpush.xpose.msra.mxu0 0.0
        %723 = vmatpush.xpose.msra.mxu0 0.0
        %724 = vmatpush.xpose.msra.mxu0 0.0
        %725 = vmatpush.xpose.msra.mxu0 0.0
        %726 = vmatpush.xpose.msra.mxu0 0.0
        %727 = vmatpush.xpose.msra.mxu0 %v710
        %728 = vmatmul.f32.gmra.mxu0 %v707
        %v729 = vpop.f32.mrf.mxu0
        %v730 = vadd.f32 0.0, %v729
        %731 = vdwg.mxu0
        %v733 = vsel %vm568, %v683, 0
        %v736 = vsel %vm568, %v691, 0
        %738 = vmatpush.xpose.msra.mxu0 0.0
        %739 = vmatpush.xpose.msra.mxu0 0.0
        %740 = vmatpush.xpose.msra.mxu0 0.0
        %741 = vmatpush.xpose.msra.mxu0 0.0
        %742 = vmatpush.xpose.msra.mxu0 0.0
        %743 = vmatpush.xpose.msra.mxu0 0.0
        %744 = vmatpush.xpose.msra.mxu0 0.0
        %745 = vmatpush.xpose.msra.mxu0 0.0
        %746 = vmatpush.xpose.msra.mxu0 0.0
        %747 = vmatpush.xpose.msra.mxu0 0.0
        %748 = vmatpush.xpose.msra.mxu0 0.0
        %749 = vmatpush.xpose.msra.mxu0 0.0
        %750 = vmatpush.xpose.msra.mxu0 0.0
        %751 = vmatpush.xpose.msra.mxu0 0.0
        %752 = vmatpush.xpose.msra.mxu0 0.0
        %753 = vmatpush.xpose.msra.mxu0 %v736
        %754 = vmatmul.f32.gmra.mxu0 %v733
        %v755 = vpop.f32.mrf.mxu0
        %v756 = vadd.f32 0.0, %v755
        %757 = vdwg.mxu0
        %v759 = vsel %vm568, %v684, 0
        %v762 = vsel %vm568, %v692, 0
        %764 = vmatpush.xpose.msra.mxu0 0.0
        %765 = vmatpush.xpose.msra.mxu0 0.0
        %766 = vmatpush.xpose.msra.mxu0 0.0
        %767 = vmatpush.xpose.msra.mxu0 0.0
        %768 = vmatpush.xpose.msra.mxu0 0.0
        %769 = vmatpush.xpose.msra.mxu0 0.0
        %770 = vmatpush.xpose.msra.mxu0 0.0
        %771 = vmatpush.xpose.msra.mxu0 0.0
        %772 = vmatpush.xpose.msra.mxu0 0.0
        %773 = vmatpush.xpose.msra.mxu0 0.0
        %774 = vmatpush.xpose.msra.mxu0 0.0
        %775 = vmatpush.xpose.msra.mxu0 0.0
        %776 = vmatpush.xpose.msra.mxu0 0.0
        %777 = vmatpush.xpose.msra.mxu0 0.0
        %778 = vmatpush.xpose.msra.mxu0 0.0
        %779 = vmatpush.xpose.msra.mxu0 %v762
        %780 = vmatmul.f32.gmra.mxu0 %v759
        %v781 = vpop.f32.mrf.mxu0
        %v782 = vadd.f32 0.0, %v781
        %783 = vdwg.mxu0
        %v785 = vsel %vm568, %v685, 0
        %v788 = vsel %vm568, %v693, 0
        %790 = vmatpush.xpose.msra.mxu0 0.0
        %791 = vmatpush.xpose.msra.mxu0 0.0
        %792 = vmatpush.xpose.msra.mxu0 0.0
        %793 = vmatpush.xpose.msra.mxu0 0.0
        %794 = vmatpush.xpose.msra.mxu0 0.0
        %795 = vmatpush.xpose.msra.mxu0 0.0
        %796 = vmatpush.xpose.msra.mxu0 0.0
        %797 = vmatpush.xpose.msra.mxu0 0.0
        %798 = vmatpush.xpose.msra.mxu0 0.0
        %799 = vmatpush.xpose.msra.mxu0 0.0
        %800 = vmatpush.xpose.msra.mxu0 0.0
        %801 = vmatpush.xpose.msra.mxu0 0.0
        %802 = vmatpush.xpose.msra.mxu0 0.0
        %803 = vmatpush.xpose.msra.mxu0 0.0
        %804 = vmatpush.xpose.msra.mxu0 0.0
        %805 = vmatpush.xpose.msra.mxu0 %v788
        %806 = vmatmul.f32.gmra.mxu0 %v785
        %v807 = vpop.f32.mrf.mxu0
        %v808 = vadd.f32 0.0, %v807
        %809 = vdwg.mxu0
        %v811 = vsel %vm568, %v686, 0
        %v814 = vsel %vm568, %v694, 0
        %816 = vmatpush.xpose.msra.mxu0 0.0
        %817 = vmatpush.xpose.msra.mxu0 0.0
        %818 = vmatpush.xpose.msra.mxu0 0.0
        %819 = vmatpush.xpose.msra.mxu0 0.0
        %820 = vmatpush.xpose.msra.mxu0 0.0
        %821 = vmatpush.xpose.msra.mxu0 0.0
        %822 = vmatpush.xpose.msra.mxu0 0.0
        %823 = vmatpush.xpose.msra.mxu0 0.0
        %824 = vmatpush.xpose.msra.mxu0 0.0
        %825 = vmatpush.xpose.msra.mxu0 0.0
        %826 = vmatpush.xpose.msra.mxu0 0.0
        %827 = vmatpush.xpose.msra.mxu0 0.0
        %828 = vmatpush.xpose.msra.mxu0 0.0
        %829 = vmatpush.xpose.msra.mxu0 0.0
        %830 = vmatpush.xpose.msra.mxu0 0.0
        %831 = vmatpush.xpose.msra.mxu0 %v814
        %832 = vmatmul.f32.gmra.mxu0 %v811
        %v833 = vpop.f32.mrf.mxu0
        %v834 = vadd.f32 0.0, %v833
        %835 = vdwg.mxu0
        %v837 = vsel %vm568, %v687, 0
        %v840 = vsel %vm568, %v695, 0
        %842 = vmatpush.xpose.msra.mxu0 0.0
        %843 = vmatpush.xpose.msra.mxu0 0.0
        %844 = vmatpush.xpose.msra.mxu0 0.0
        %845 = vmatpush.xpose.msra.mxu0 0.0
        %846 = vmatpush.xpose.msra.mxu0 0.0
        %847 = vmatpush.xpose.msra.mxu0 0.0
        %848 = vmatpush.xpose.msra.mxu0 0.0
        %849 = vmatpush.xpose.msra.mxu0 0.0
        %850 = vmatpush.xpose.msra.mxu0 0.0
        %851 = vmatpush.xpose.msra.mxu0 0.0
        %852 = vmatpush.xpose.msra.mxu0 0.0
        %853 = vmatpush.xpose.msra.mxu0 0.0
        %854 = vmatpush.xpose.msra.mxu0 0.0
        %855 = vmatpush.xpose.msra.mxu0 0.0
        %856 = vmatpush.xpose.msra.mxu0 0.0
        %857 = vmatpush.xpose.msra.mxu0 %v840
        %858 = vmatmul.f32.gmra.mxu0 %v837
        %v859 = vpop.f32.mrf.mxu0
        %v860 = vadd.f32 0.0, %v859
        %861 = vdwg.mxu0
        %v863 = vsel %vm568, %v688, 0
        %v866 = vsel %vm568, %v696, 0
        %868 = vmatpush.xpose.msra.mxu0 0.0
        %869 = vmatpush.xpose.msra.mxu0 0.0
        %870 = vmatpush.xpose.msra.mxu0 0.0
        %871 = vmatpush.xpose.msra.mxu0 0.0
        %872 = vmatpush.xpose.msra.mxu0 0.0
        %873 = vmatpush.xpose.msra.mxu0 0.0
        %874 = vmatpush.xpose.msra.mxu0 0.0
        %875 = vmatpush.xpose.msra.mxu0 0.0
        %876 = vmatpush.xpose.msra.mxu0 0.0
        %877 = vmatpush.xpose.msra.mxu0 0.0
        %878 = vmatpush.xpose.msra.mxu0 0.0
        %879 = vmatpush.xpose.msra.mxu0 0.0
        %880 = vmatpush.xpose.msra.mxu0 0.0
        %881 = vmatpush.xpose.msra.mxu0 0.0
        %882 = vmatpush.xpose.msra.mxu0 0.0
        %883 = vmatpush.xpose.msra.mxu0 %v866
        %884 = vmatmul.f32.gmra.mxu0 %v863
        %v885 = vpop.f32.mrf.mxu0
        %v886 = vadd.f32 0.0, %v885
        %887 = vdwg.mxu0
        %v889 = vsel %vm568, %v689, 0
        %v892 = vsel %vm568, %v697, 0
        %894 = vmatpush.xpose.msra.mxu0 0.0
        %895 = vmatpush.xpose.msra.mxu0 0.0
        %896 = vmatpush.xpose.msra.mxu0 0.0
        %897 = vmatpush.xpose.msra.mxu0 0.0
        %898 = vmatpush.xpose.msra.mxu0 0.0
        %899 = vmatpush.xpose.msra.mxu0 0.0
        %900 = vmatpush.xpose.msra.mxu0 0.0
        %901 = vmatpush.xpose.msra.mxu0 0.0
        %902 = vmatpush.xpose.msra.mxu0 0.0
        %903 = vmatpush.xpose.msra.mxu0 0.0
        %904 = vmatpush.xpose.msra.mxu0 0.0
        %905 = vmatpush.xpose.msra.mxu0 0.0
        %906 = vmatpush.xpose.msra.mxu0 0.0
        %907 = vmatpush.xpose.msra.mxu0 0.0
        %908 = vmatpush.xpose.msra.mxu0 0.0
        %909 = vmatpush.xpose.msra.mxu0 %v892
        %910 = vmatmul.f32.gmra.mxu0 %v889
        %v911 = vpop.f32.mrf.mxu0
        %v912 = vadd.f32 0.0, %v911
        %913 = vdwg.mxu0
        %v914 = vmul.f32 %v730, 0.35355338
        %v915 = vmul.f32 %v756, 0.35355338
        %v916 = vmul.f32 %v782, 0.35355338
        %v917 = vmul.f32 %v808, 0.35355338
        %v918 = vmul.f32 %v834, 0.35355338
        %v919 = vmul.f32 %v860, 0.35355338
        %v920 = vmul.f32 %v886, 0.35355338
        %v921 = vmul.f32 %v912, 0.35355338
        %v922 = vld [vmem:[%s464] sm:$0x1]
        %v923 = vld [vmem:[%s464 + $0x1] sm:$0x1]
        %vm924 = vcmp.gt.f32.partialorder %v922, 0.0
        %vm925 = vcmp.gt.f32.partialorder %v923, 0.0
        %v926 = vsel %vm924, 0.0, -1e+09
        %v927 = vsel %vm925, 0.0, -1e+09
        %v930 = vperm.slane %v926, 0
        %v931 = vperm.slane %v927, 0
        %v934 = vadd.f32 %v914, %v930
        %v935 = vadd.f32 %v915, %v931
        %v936 = vadd.f32 %v916, %v930
        %v937 = vadd.f32 %v917, %v931
        %v938 = vadd.f32 %v918, %v930
        %v939 = vadd.f32 %v919, %v931
        %v940 = vadd.f32 %v920, %v930
        %v941 = vadd.f32 %v921, %v931
        %v942 = vsel %vm568, %v934, -inf
        %943 = vmax.xlane.f32.xlu0 %v942
        %v944 = vpop.xlane.xlu0 %943
        %v945 = vsel %vm568, %v935, -inf
        %946 = vmax.xlane.f32.xlu0 %v945
        %v947 = vpop.xlane.xlu0 %946
        %v948 = vsel %vm568, %v936, -inf
        %949 = vmax.xlane.f32.xlu0 %v948
        %v950 = vpop.xlane.xlu0 %949
        %v951 = vsel %vm568, %v937, -inf
        %952 = vmax.xlane.f32.xlu0 %v951
        %v953 = vpop.xlane.xlu0 %952
        %v954 = vsel %vm568, %v938, -inf
        %955 = vmax.xlane.f32.xlu0 %v954
        %v956 = vpop.xlane.xlu0 %955
        %v957 = vsel %vm568, %v939, -inf
        %958 = vmax.xlane.f32.xlu0 %v957
        %v959 = vpop.xlane.xlu0 %958
        %v960 = vsel %vm568, %v940, -inf
        %961 = vmax.xlane.f32.xlu0 %v960
        %v962 = vpop.xlane.xlu0 %961
        %v963 = vsel %vm568, %v941, -inf
        %964 = vmax.xlane.f32.xlu0 %v963
        %v965 = vpop.xlane.xlu0 %964
        %v966 = vsub.f32 %v934, %v944
        %v967 = vsub.f32 %v935, %v947
        %v968 = vsub.f32 %v936, %v950
        %v969 = vsub.f32 %v937, %v953
        %v970 = vsub.f32 %v938, %v956
        %v971 = vsub.f32 %v939, %v959
        %v972 = vsub.f32 %v940, %v962
        %v973 = vsub.f32 %v941, %v965
        %v974 = vmul.f32 %v966, 1.442695
        %v975 = vpow.pop %v974
        %v976 = vmul.f32 %v967, 1.442695
        %v977 = vpow.pop %v976
        %v978 = vmul.f32 %v968, 1.442695
        %v979 = vpow.pop %v978
        %v980 = vmul.f32 %v969, 1.442695
        %v981 = vpow.pop %v980
        %v982 = vmul.f32 %v970, 1.442695
        %v983 = vpow.pop %v982
        %v984 = vmul.f32 %v971, 1.442695
        %v985 = vpow.pop %v984
        %v986 = vmul.f32 %v972, 1.442695
        %v987 = vpow.pop %v986
        %v988 = vmul.f32 %v973, 1.442695
        %v989 = vpow.pop %v988
        %v990 = vsel %vm568, %v975, 0.0
        %991 = vadd.xlane.f32.xlu0 %v990
        %v992 = vpop.xlane.xlu0 %991
        %v993 = vsel %vm568, %v977, 0.0
        %994 = vadd.xlane.f32.xlu0 %v993
        %v995 = vpop.xlane.xlu0 %994
        %v996 = vsel %vm568, %v979, 0.0
        %997 = vadd.xlane.f32.xlu0 %v996
        %v998 = vpop.xlane.xlu0 %997
        %v999 = vsel %vm568, %v981, 0.0
        %1000 = vadd.xlane.f32.xlu0 %v999
        %v1001 = vpop.xlane.xlu0 %1000
        %v1002 = vsel %vm568, %v983, 0.0
        %1003 = vadd.xlane.f32.xlu0 %v1002
        %v1004 = vpop.xlane.xlu0 %1003
        %v1005 = vsel %vm568, %v985, 0.0
        %1006 = vadd.xlane.f32.xlu0 %v1005
        %v1007 = vpop.xlane.xlu0 %1006
        %v1008 = vsel %vm568, %v987, 0.0
        %1009 = vadd.xlane.f32.xlu0 %v1008
        %v1010 = vpop.xlane.xlu0 %1009
        %v1011 = vsel %vm568, %v989, 0.0
        %1012 = vadd.xlane.f32.xlu0 %v1011
        %v1013 = vpop.xlane.xlu0 %1012
        %v1014 = vrcp.pop %v992
        %v1015 = vrcp.pop %v995
        %v1016 = vrcp.pop %v998
        %v1017 = vrcp.pop %v1001
        %v1018 = vrcp.pop %v1004
        %v1019 = vrcp.pop %v1007
        %v1020 = vrcp.pop %v1010
        %v1021 = vrcp.pop %v1013
        %v1022 = vmul.f32 %v975, %v1014
        %v1023 = vmul.f32 %v977, %v1015
        %v1024 = vmul.f32 %v979, %v1016
        %v1025 = vmul.f32 %v981, %v1017
        %v1026 = vmul.f32 %v983, %v1018
        %v1027 = vmul.f32 %v985, %v1019
        %v1028 = vmul.f32 %v987, %v1020
        %v1029 = vmul.f32 %v989, %v1021
        %v1031 = vsel %vm568, %v1022, 0
        %1033 = vmatpush.msra.mxu0 0.0
        %1034 = vmatpush.msra.mxu0 0.0
        %1035 = vmatpush.msra.mxu0 0.0
        %1036 = vmatpush.msra.mxu0 0.0
        %1037 = vmatpush.msra.mxu0 0.0
        %1038 = vmatpush.msra.mxu0 0.0
        %1039 = vmatpush.msra.mxu0 0.0
        %1040 = vmatpush.msra.mxu0 0.0
        %1041 = vmatpush.msra.mxu0 0.0
        %1042 = vmatpush.msra.mxu0 0.0
        %1043 = vmatpush.msra.mxu0 0.0
        %1044 = vmatpush.msra.mxu0 0.0
        %1045 = vmatpush.msra.mxu0 0.0
        %1046 = vmatpush.msra.mxu0 0.0
        %1047 = vmatpush.msra.mxu0 0.0
        %1048 = vmatpush.msra.mxu0 %v698
        %1049 = vmatmul.f32.gmra.mxu0 %v1031
        %v1050 = vpop.f32.mrf.mxu0
        %v1051 = vadd.f32 0.0, %v1050
        %1052 = vdwg.mxu0
        %v1054 = vsel %vm568, %v1023, 0
        %1056 = vmatpush.msra.mxu0 0.0
        %1057 = vmatpush.msra.mxu0 0.0
        %1058 = vmatpush.msra.mxu0 0.0
        %1059 = vmatpush.msra.mxu0 0.0
        %1060 = vmatpush.msra.mxu0 0.0
        %1061 = vmatpush.msra.mxu0 0.0
        %1062 = vmatpush.msra.mxu0 0.0
        %1063 = vmatpush.msra.mxu0 0.0
        %1064 = vmatpush.msra.mxu0 0.0
        %1065 = vmatpush.msra.mxu0 0.0
        %1066 = vmatpush.msra.mxu0 0.0
        %1067 = vmatpush.msra.mxu0 0.0
        %1068 = vmatpush.msra.mxu0 0.0
        %1069 = vmatpush.msra.mxu0 0.0
        %1070 = vmatpush.msra.mxu0 0.0
        %1071 = vmatpush.msra.mxu0 %v699
        %1072 = vmatmul.f32.gmra.mxu0 %v1054
        %v1073 = vpop.f32.mrf.mxu0
        %v1074 = vadd.f32 0.0, %v1073
        %1075 = vdwg.mxu0
        %v1077 = vsel %vm568, %v1024, 0
        %1079 = vmatpush.msra.mxu0 0.0
        %1080 = vmatpush.msra.mxu0 0.0
        %1081 = vmatpush.msra.mxu0 0.0
        %1082 = vmatpush.msra.mxu0 0.0
        %1083 = vmatpush.msra.mxu0 0.0
        %1084 = vmatpush.msra.mxu0 0.0
        %1085 = vmatpush.msra.mxu0 0.0
        %1086 = vmatpush.msra.mxu0 0.0
        %1087 = vmatpush.msra.mxu0 0.0
        %1088 = vmatpush.msra.mxu0 0.0
        %1089 = vmatpush.msra.mxu0 0.0
        %1090 = vmatpush.msra.mxu0 0.0
        %1091 = vmatpush.msra.mxu0 0.0
        %1092 = vmatpush.msra.mxu0 0.0
        %1093 = vmatpush.msra.mxu0 0.0
        %1094 = vmatpush.msra.mxu0 %v700
        %1095 = vmatmul.f32.gmra.mxu0 %v1077
        %v1096 = vpop.f32.mrf.mxu0
        %v1097 = vadd.f32 0.0, %v1096
        %1098 = vdwg.mxu0
        %v1100 = vsel %vm568, %v1025, 0
        %1102 = vmatpush.msra.mxu0 0.0
        %1103 = vmatpush.msra.mxu0 0.0
        %1104 = vmatpush.msra.mxu0 0.0
        %1105 = vmatpush.msra.mxu0 0.0
        %1106 = vmatpush.msra.mxu0 0.0
        %1107 = vmatpush.msra.mxu0 0.0
        %1108 = vmatpush.msra.mxu0 0.0
        %1109 = vmatpush.msra.mxu0 0.0
        %1110 = vmatpush.msra.mxu0 0.0
        %1111 = vmatpush.msra.mxu0 0.0
        %1112 = vmatpush.msra.mxu0 0.0
        %1113 = vmatpush.msra.mxu0 0.0
        %1114 = vmatpush.msra.mxu0 0.0
        %1115 = vmatpush.msra.mxu0 0.0
        %1116 = vmatpush.msra.mxu0 0.0
        %1117 = vmatpush.msra.mxu0 %v701
        %1118 = vmatmul.f32.gmra.mxu0 %v1100
        %v1119 = vpop.f32.mrf.mxu0
        %v1120 = vadd.f32 0.0, %v1119
        %1121 = vdwg.mxu0
        %v1123 = vsel %vm568, %v1026, 0
        %1125 = vmatpush.msra.mxu0 0.0
        %1126 = vmatpush.msra.mxu0 0.0
        %1127 = vmatpush.msra.mxu0 0.0
        %1128 = vmatpush.msra.mxu0 0.0
        %1129 = vmatpush.msra.mxu0 0.0
        %1130 = vmatpush.msra.mxu0 0.0
        %1131 = vmatpush.msra.mxu0 0.0
        %1132 = vmatpush.msra.mxu0 0.0
        %1133 = vmatpush.msra.mxu0 0.0
        %1134 = vmatpush.msra.mxu0 0.0
        %1135 = vmatpush.msra.mxu0 0.0
        %1136 = vmatpush.msra.mxu0 0.0
        %1137 = vmatpush.msra.mxu0 0.0
        %1138 = vmatpush.msra.mxu0 0.0
        %1139 = vmatpush.msra.mxu0 0.0
        %1140 = vmatpush.msra.mxu0 %v702
        %1141 = vmatmul.f32.gmra.mxu0 %v1123
        %v1142 = vpop.f32.mrf.mxu0
        %v1143 = vadd.f32 0.0, %v1142
        %1144 = vdwg.mxu0
        %v1146 = vsel %vm568, %v1027, 0
        %1148 = vmatpush.msra.mxu0 0.0
        %1149 = vmatpush.msra.mxu0 0.0
        %1150 = vmatpush.msra.mxu0 0.0
        %1151 = vmatpush.msra.mxu0 0.0
        %1152 = vmatpush.msra.mxu0 0.0
        %1153 = vmatpush.msra.mxu0 0.0
        %1154 = vmatpush.msra.mxu0 0.0
        %1155 = vmatpush.msra.mxu0 0.0
        %1156 = vmatpush.msra.mxu0 0.0
        %1157 = vmatpush.msra.mxu0 0.0
        %1158 = vmatpush.msra.mxu0 0.0
        %1159 = vmatpush.msra.mxu0 0.0
        %1160 = vmatpush.msra.mxu0 0.0
        %1161 = vmatpush.msra.mxu0 0.0
        %1162 = vmatpush.msra.mxu0 0.0
        %1163 = vmatpush.msra.mxu0 %v703
        %1164 = vmatmul.f32.gmra.mxu0 %v1146
        %v1165 = vpop.f32.mrf.mxu0
        %v1166 = vadd.f32 0.0, %v1165
        %1167 = vdwg.mxu0
        %v1169 = vsel %vm568, %v1028, 0
        %1171 = vmatpush.msra.mxu0 0.0
        %1172 = vmatpush.msra.mxu0 0.0
        %1173 = vmatpush.msra.mxu0 0.0
        %1174 = vmatpush.msra.mxu0 0.0
        %1175 = vmatpush.msra.mxu0 0.0
        %1176 = vmatpush.msra.mxu0 0.0
        %1177 = vmatpush.msra.mxu0 0.0
        %1178 = vmatpush.msra.mxu0 0.0
        %1179 = vmatpush.msra.mxu0 0.0
        %1180 = vmatpush.msra.mxu0 0.0
        %1181 = vmatpush.msra.mxu0 0.0
        %1182 = vmatpush.msra.mxu0 0.0
        %1183 = vmatpush.msra.mxu0 0.0
        %1184 = vmatpush.msra.mxu0 0.0
        %1185 = vmatpush.msra.mxu0 0.0
        %1186 = vmatpush.msra.mxu0 %v704
        %1187 = vmatmul.f32.gmra.mxu0 %v1169
        %v1188 = vpop.f32.mrf.mxu0
        %v1189 = vadd.f32 0.0, %v1188
        %1190 = vdwg.mxu0
        %v1192 = vsel %vm568, %v1029, 0
        %1194 = vmatpush.msra.mxu0 0.0
        %1195 = vmatpush.msra.mxu0 0.0
        %1196 = vmatpush.msra.mxu0 0.0
        %1197 = vmatpush.msra.mxu0 0.0
        %1198 = vmatpush.msra.mxu0 0.0
        %1199 = vmatpush.msra.mxu0 0.0
        %1200 = vmatpush.msra.mxu0 0.0
        %1201 = vmatpush.msra.mxu0 0.0
        %1202 = vmatpush.msra.mxu0 0.0
        %1203 = vmatpush.msra.mxu0 0.0
        %1204 = vmatpush.msra.mxu0 0.0
        %1205 = vmatpush.msra.mxu0 0.0
        %1206 = vmatpush.msra.mxu0 0.0
        %1207 = vmatpush.msra.mxu0 0.0
        %1208 = vmatpush.msra.mxu0 0.0
        %1209 = vmatpush.msra.mxu0 %v705
        %1210 = vmatmul.f32.gmra.mxu0 %v1192
        %v1211 = vpop.f32.mrf.mxu0
        %v1212 = vadd.f32 0.0, %v1211
        %1213 = vdwg.mxu0
        %1214 = vst.msk [vmem:[#allocation5] sm:$0xff] %vm568, %v1051
        %1215 = vst.msk [vmem:[#allocation5 + $0x8] sm:$0xff] %vm568, %v1074
        %1217 = vrot.lane.b32.xlu0 %v1097, 8
        %v1218 = vpop.permute.xlu0 %1217
        %vm1220 = vcmask 130112
        %1221 = vst.msk [vmem:[#allocation5] sm:$0xff] %vm1220, %v1218
        %1223 = vrot.lane.b32.xlu0 %v1120, 8
        %v1224 = vpop.permute.xlu0 %1223
        %1226 = vst.msk [vmem:[#allocation5 + $0x8] sm:$0xff] %vm1220, %v1224
        %1228 = vrot.lane.b32.xlu0 %v1143, 16
        %v1229 = vpop.permute.xlu0 %1228
        %vm1231 = vcmask 195712
        %1232 = vst.msk [vmem:[#allocation5] sm:$0xff] %vm1231, %v1229
        %1234 = vrot.lane.b32.xlu0 %v1166, 16
        %v1235 = vpop.permute.xlu0 %1234
        %1237 = vst.msk [vmem:[#allocation5 + $0x8] sm:$0xff] %vm1231, %v1235
        %1239 = vrot.lane.b32.xlu0 %v1189, 24
        %v1240 = vpop.permute.xlu0 %1239
        %vm1242 = vcmask 261312
        %1243 = vst.msk [vmem:[#allocation5] sm:$0xff] %vm1242, %v1240
        %1245 = vrot.lane.b32.xlu0 %v1212, 24
        %v1246 = vpop.permute.xlu0 %1245
        %1248 = vst.msk [vmem:[#allocation5 + $0x8] sm:$0xff] %vm1242, %v1246
        %v1249 = vld [vmem:[#allocation5] sm:$0xff]
        %v1250 = vld [vmem:[#allocation5 + $0x8] sm:$0xff]
        %v1251 = vld [vmem:[%s4] sm:$0xff]
        %v1252 = vld [vmem:[%s4 + $0x8] sm:$0xff]
        %v1253 = vld [vmem:[%s4 + $0x10] sm:$0xff]
        %v1254 = vld [vmem:[%s4 + $0x18] sm:$0xff]
        %v1255 = vld [vmem:[%s5] sm:$0x1]
        %v1257 = vperm.slane %v1255, 0
        %v1260 = vsel %vm538, %v1249, 0
        %v1263 = vsel %vm538, %v1250, 0
        %1265 = vmatpush.msra.mxu0 0.0
        %1266 = vmatpush.msra.mxu0 0.0
        %1267 = vmatpush.msra.mxu0 0.0
        %1268 = vmatpush.msra.mxu0 0.0
        %1269 = vmatpush.msra.mxu0 0.0
        %1270 = vmatpush.msra.mxu0 0.0
        %1271 = vmatpush.msra.mxu0 0.0
        %1272 = vmatpush.msra.mxu0 0.0
        %1273 = vmatpush.msra.mxu0 0.0
        %1274 = vmatpush.msra.mxu0 0.0
        %1275 = vmatpush.msra.mxu0 0.0
        %1276 = vmatpush.msra.mxu0 0.0
        %1277 = vmatpush.msra.mxu0 %v1254
        %1278 = vmatpush.msra.mxu0 %v1253
        %1279 = vmatpush.msra.mxu0 %v1252
        %1280 = vmatpush.msra.mxu0 %v1251
        %1281 = vmatmul.f32.gmra.mxu0 %v1260
        %v1282 = vpop.f32.mrf.mxu0
        %v1283 = vadd.f32 %v1257, %v1282
        %1284 = vmatmul.f32.gmra.mxu0 %v1263
        %v1285 = vpop.f32.mrf.mxu0
        %v1286 = vadd.f32 %v1257, %v1285
        %1287 = vdwg.mxu0
        %v1288 = vadd.f32 %v1283, %v528
        %v1289 = vadd.f32 %v1286, %v529
        %v1290 = vld [vmem:[%s6] sm:$0x1]
        %v1291 = vld [vmem:[%s7] sm:$0x1]
        %v1292 = vsel %vm538, %v1288, 0.0
        %1293 = vadd.xlane.f32.xlu0 %v1292
        %v1294 = vpop.xlane.xlu0 %1293
        %v1295 = vsel %vm538, %v1289, 0.0
        %1296 = vadd.xlane.f32.xlu0 %v1295
        %v1297 = vpop.xlane.xlu0 %1296
        %v1298 = vrcp.pop 32.0
        %v1299 = vmul.f32 32.0, %v1298
        %v1300 = vsub.f32 1.0, %v1299
        %v1301 = vmul.f32 %v1298, %v1300
        %v1302 = vadd.f32 %v1298, %v1301
        %vm1303 = vweird.f32 %v1298
        %v1304 = vsel %vm1303, %v1298, %v1302
        %v1305 = vmul.f32 %v1294, %v1304
        %v1306 = vmul.f32 %v1297, %v1304
        %v1307 = vsub.f32 %v1288, %v1305
        %v1308 = vsub.f32 %v1289, %v1306
        %v1309 = vmul.f32 %v1307, %v1307
        %v1310 = vmul.f32 %v1308, %v1308
        %v1311 = vsel %vm538, %v1309, 0.0
        %1312 = vadd.xlane.f32.xlu0 %v1311
        %v1313 = vpop.xlane.xlu0 %1312
        %v1314 = vsel %vm538, %v1310, 0.0
        %1315 = vadd.xlane.f32.xlu0 %v1314
        %v1316 = vpop.xlane.xlu0 %1315
        %v1317 = vmul.f32 %v1313, %v1304
        %v1318 = vmul.f32 %v1316, %v1304
        %v1319 = vadd.f32 %v1317, 1e-05
        %v1320 = vadd.f32 %v1318, 1e-05
        %v1321 = vrsqrt.pop %v1319
        %v1322 = vmul.f32 %v1321, %v1319
        %v1323 = vmul.f32 %v1322, %v1321
        %v1324 = vmul.f32 0.5, %v1323
        %v1325 = vsub.f32 1.5, %v1324
        %v1326 = vmul.f32 %v1321, %v1325
        %vm1327 = vweird.f32 %v1319
        %vm1328 = vweird.f32 %v1321
        %vm1329 = vmor %vm1327, %vm1328
        %v1330 = vsel %vm1329, %v1321, %v1326
        %v1331 = vrsqrt.pop %v1320
        %v1332 = vmul.f32 %v1331, %v1320
        %v1333 = vmul.f32 %v1332, %v1331
        %v1334 = vmul.f32 0.5, %v1333
        %v1335 = vsub.f32 1.5, %v1334
        %v1336 = vmul.f32 %v1331, %v1335
        %vm1337 = vweird.f32 %v1320
        %vm1338 = vweird.f32 %v1331
        %vm1339 = vmor %vm1337, %vm1338
        %v1340 = vsel %vm1339, %v1331, %v1336
        %v1341 = vmul.f32 %v1307, %v1330
        %v1342 = vmul.f32 %v1308, %v1340
        %v1344 = vperm.slane %v1290, 0
        %v1346 = vmul.f32 %v1341, %v1344
        %v1347 = vmul.f32 %v1342, %v1344
        %v1349 = vperm.slane %v1291, 0
        %v1351 = vadd.f32 %v1346, %v1349
        %v1352 = vadd.f32 %v1347, %v1349
        %v1353 = vld [vmem:[#allocation9] sm:$0xff]
        %v1354 = vld [vmem:[#allocation9 + $0x8] sm:$0xff]
        %v1355 = vld [vmem:[#allocation9 + $0x10] sm:$0xff]
        %v1356 = vld [vmem:[#allocation9 + $0x18] sm:$0xff]
        %v1357 = vld [vmem:[%s9] sm:$0x1]
        %v1359 = vperm.slane %v1357, 0
        %v1362 = vsel %vm538, %v1351, 0
        %v1365 = vsel %vm538, %v1352, 0
        %1367 = vmatpush.msra.mxu0 0.0
        %1368 = vmatpush.msra.mxu0 0.0
        %1369 = vmatpush.msra.mxu0 0.0
        %1370 = vmatpush.msra.mxu0 0.0
        %1371 = vmatpush.msra.mxu0 0.0
        %1372 = vmatpush.msra.mxu0 0.0
        %1373 = vmatpush.msra.mxu0 0.0
        %1374 = vmatpush.msra.mxu0 0.0
        %1375 = vmatpush.msra.mxu0 0.0
        %1376 = vmatpush.msra.mxu0 0.0
        %1377 = vmatpush.msra.mxu0 0.0
        %1378 = vmatpush.msra.mxu0 0.0
        %1379 = vmatpush.msra.mxu0 %v1356
        %1380 = vmatpush.msra.mxu0 %v1355
        %1381 = vmatpush.msra.mxu0 %v1354
        %1382 = vmatpush.msra.mxu0 %v1353
        %1383 = vmatmul.f32.gmra.mxu0 %v1362
        %v1384 = vpop.f32.mrf.mxu0
        %v1385 = vadd.f32 %v1359, %v1384
        %1386 = vmatmul.f32.gmra.mxu0 %v1365
        %v1387 = vpop.f32.mrf.mxu0
        %v1388 = vadd.f32 %v1359, %v1387
        %1389 = vdwg.mxu0
        %v1390 = vmax.f32 %v1385, 0.0
        %v1391 = vmax.f32 %v1388, 0.0
        %v1392 = vld [vmem:[%s10] sm:$0xff]
        %v1393 = vld [vmem:[%s10 + $0x8] sm:$0xff]
        %v1394 = vld [vmem:[%s10 + $0x10] sm:$0xff]
        %v1395 = vld [vmem:[%s10 + $0x18] sm:$0xff]
        %v1396 = vld [vmem:[%s10 + $0x20] sm:$0xff]
        %v1397 = vld [vmem:[%s10 + $0x28] sm:$0xff]
        %v1398 = vld [vmem:[%s10 + $0x30] sm:$0xff]
        %v1399 = vld [vmem:[%s10 + $0x38] sm:$0xff]
        %v1400 = vld [vmem:[%s11] sm:$0x1]
        %v1402 = vperm.slane %v1400, 0
        %vm1404 = vcmask 523264
        %v1406 = vsel %vm1404, %v1390, 0
        %v1409 = vsel %vm1404, %v1391, 0
        %1411 = vmatpush.msra.mxu0 0.0
        %1412 = vmatpush.msra.mxu0 0.0
        %1413 = vmatpush.msra.mxu0 0.0
        %1414 = vmatpush.msra.mxu0 0.0
        %1415 = vmatpush.msra.mxu0 0.0
        %1416 = vmatpush.msra.mxu0 0.0
        %1417 = vmatpush.msra.mxu0 0.0
        %1418 = vmatpush.msra.mxu0 0.0
        %1419 = vmatpush.msra.mxu0 %v1399
        %1420 = vmatpush.msra.mxu0 %v1398
        %1421 = vmatpush.msra.mxu0 %v1397
        %1422 = vmatpush.msra.mxu0 %v1396
        %1423 = vmatpush.msra.mxu0 %v1395
        %1424 = vmatpush.msra.mxu0 %v1394
        %1425 = vmatpush.msra.mxu0 %v1393
        %1426 = vmatpush.msra.mxu0 %v1392
        %1427 = vmatmul.f32.gmra.mxu0 %v1406
        %v1428 = vpop.f32.mrf.mxu0
        %v1429 = vadd.f32 %v1402, %v1428
        %1430 = vmatmul.f32.gmra.mxu0 %v1409
        %v1431 = vpop.f32.mrf.mxu0
        %v1432 = vadd.f32 %v1402, %v1431
        %1433 = vdwg.mxu0
        %v1434 = vadd.f32 %v1429, %v1351
        %v1435 = vadd.f32 %v1432, %v1352
        %v1436 = vld [vmem:[%s12] sm:$0x1]
        %v1437 = vld [vmem:[%s13] sm:$0x1]
        %v1438 = vsel %vm538, %v1434, 0.0
        %1439 = vadd.xlane.f32.xlu0 %v1438
        %v1440 = vpop.xlane.xlu0 %1439
        %v1441 = vsel %vm538, %v1435, 0.0
        %1442 = vadd.xlane.f32.xlu0 %v1441
        %v1443 = vpop.xlane.xlu0 %1442
        %v1444 = vmul.f32 %v1440, %v1304
        %v1445 = vmul.f32 %v1443, %v1304
        %v1446 = vsub.f32 %v1434, %v1444
        %v1447 = vsub.f32 %v1435, %v1445
        %v1448 = vmul.f32 %v1446, %v1446
        %v1449 = vmul.f32 %v1447, %v1447
        %v1450 = vsel %vm538, %v1448, 0.0
        %1451 = vadd.xlane.f32.xlu0 %v1450
        %v1452 = vpop.xlane.xlu0 %1451
        %v1453 = vsel %vm538, %v1449, 0.0
        %1454 = vadd.xlane.f32.xlu0 %v1453
        %v1455 = vpop.xlane.xlu0 %1454
        %v1456 = vmul.f32 %v1452, %v1304
        %v1457 = vmul.f32 %v1455, %v1304
        %v1458 = vadd.f32 %v1456, 1e-05
        %v1459 = vadd.f32 %v1457, 1e-05
        %v1460 = vrsqrt.pop %v1458
        %v1461 = vmul.f32 %v1460, %v1458
        %v1462 = vmul.f32 %v1461, %v1460
        %v1463 = vmul.f32 0.5, %v1462
        %v1464 = vsub.f32 1.5, %v1463
        %v1465 = vmul.f32 %v1460, %v1464
        %vm1466 = vweird.f32 %v1458
        %vm1467 = vweird.f32 %v1460
        %vm1468 = vmor %vm1466, %vm1467
        %v1469 = vsel %vm1468, %v1460, %v1465
        %v1470 = vrsqrt.pop %v1459
        %v1471 = vmul.f32 %v1470, %v1459
        %v1472 = vmul.f32 %v1471, %v1470
        %v1473 = vmul.f32 0.5, %v1472
        %v1474 = vsub.f32 1.5, %v1473
        %v1475 = vmul.f32 %v1470, %v1474
        %vm1476 = vweird.f32 %v1459
        %vm1477 = vweird.f32 %v1470
        %vm1478 = vmor %vm1476, %vm1477
        %v1479 = vsel %vm1478, %v1470, %v1475
        %v1480 = vmul.f32 %v1446, %v1469
        %v1481 = vmul.f32 %v1447, %v1479
        %v1483 = vperm.slane %v1436, 0
        %v1485 = vmul.f32 %v1480, %v1483
        %v1486 = vmul.f32 %v1481, %v1483
        %v1488 = vperm.slane %v1437, 0
        %v1490 = vadd.f32 %v1485, %v1488
        %v1491 = vadd.f32 %v1486, %v1488
        %1492 = vst.msk [vmem:[%s519] sm:$0xff] %vm538, %v1490
        %1493 = vst.msk [vmem:[%s519 + $0x8] sm:$0xff] %vm538, %v1491
        %s1494 = sand.u32 %s344, 1
        %s1495 = scalar_lea.sflag [#allocation8], %s1494
        %s1496 = sand.u32 %s344, 1
        %s1497 = smul.addr %s1496, 16
        %s1498 = scalar_lea.vmem [#allocation11], %s1497
        // Predicated region
        $region85: #{tpu_custom_call.1} parent=75 // pred_check
          %p1499 = pneg %p354
        $region86: #{tpu_custom_call.1} parent=75 // pred_check_branch
          %1501 = sbr.rel (%p1499) target = $region88
        $region87: #{tpu_custom_call.1} parent=75 // pred_region
          %s1502 = smul.u32 2, %s32
          %1504 = vsyncadd %s1495, 0
          %s1505 = smul.addr %s1502, 8
          %s1506 = scalar_lea.hbm %s14, %s1505
          %s1507 = sshll.u32 %s1498, 4
          %s1508 = int_to_ptr.vmem [resolvable:$true] %s1507
          %s1509 = sshll.u32 %s1506, 4
          %s1510 = int_to_ptr.hbm [resolvable:$true] %s1509
          %1515 = dma.vmem_to_hbm [thread:$0]  %s1508, 256, %s1510, %s1495, 128, 128, 8
        $region88: #{tpu_custom_call.1} parent=75 // pred_fallthru
          _
      $region76: #{tpu_custom_call.1} parent=5 // pred_fallthru
        _
      %p1516 = scmp.le.s32.totalorder 2, %s27
      // Predicated region
      $region89: #{tpu_custom_call.1} parent=5 // pred_check
        %p1517 = pneg %p1516
      $region90: #{tpu_custom_call.1} parent=5 // pred_check_branch
        %1519 = sbr.rel (%p1517) target = $region92
      $region91: #{tpu_custom_call.1} parent=5 // pred_region
        %s1520 = ssub.s32 %s27, 2
        // Predicated region
        $region93: #{tpu_custom_call.1} parent=91 // pred_check
          %p1521 = pneg %p360
        $region94: #{tpu_custom_call.1} parent=91 // pred_check_branch
          %1523 = sbr.rel (%p1521) target = $region96
        $region95: #{tpu_custom_call.1} parent=91 // pred_region
          %s1524 = sand.u32 %s345, 1
          %s1525 = scalar_lea.sflag [#allocation8], %s1524
          %s1526 = sand.u32 %s345, 1
          %s1527 = smul.addr %s1526, 16
          %s1528 = scalar_lea.vmem [#allocation11], %s1527
          %1530 = dma.done %s1525, 256
        $region96: #{tpu_custom_call.1} parent=91 // pred_fallthru
          _
      $region92: #{tpu_custom_call.1} parent=5 // pred_fallthru
        _
    $region6: #{tpu_custom_call.1} parent=1 // loop_footer
      %s31 = sadd.s32 1, %s27
    $region7: #{tpu_custom_call.1} parent=1 // loop_footer_branch
      %26 = sbr.rel target = $region3
    $region8: #{tpu_custom_call.1} parent=1 // loop_exit
      _
    %1531 = vsyncpa [#allocation7], 1
    %s1532 = scalar_lea.sflag [#allocation7], 1
    %1533 = vsyncpa %s1532, 1
    %1534 = vsyncpa [#allocation10], 1
    %1535 = vsyncpa [#allocation8], 1
    %s1536 = scalar_lea.sflag [#allocation8], 1
    %1537 = vsyncpa %s1536, 1

</llo_original>
